<compile_context>
chip_gen: v7x
topology: tpu7x:2x2x1
jax: 0.10.0
libtpu: 0.0.40
codegen_flags: <defaults>
</compile_context>

<pallas_src>
import functools

import numpy as np

import jax
import jax.numpy as jnp
from jax import lax
from jax.experimental import pallas as pl
from jax.experimental.pallas import tpu as pltpu


# ----------------------------------------------------------------------------- helpers
def _round_up(a, b):
    return -(-a // b) * b


def _box_matrix(H, W, radius, hw_pad):
    """(hw_pad, hw_pad) 0/1 matrix M with M[q, p] = 1 iff pixel q lies inside the
    (2r+1)x(2r+1) window centred at p (zero padding => only valid q contribute).
    Rows/cols past H*W are zero (lane padding)."""
    hh = np.arange(H * W) // W
    ww = np.arange(H * W) % W
    m = ((np.abs(hh[:, None] - hh[None, :]) <= radius)
         & (np.abs(ww[:, None] - ww[None, :]) <= radius)).astype(np.float32)
    out = np.zeros((hw_pad, hw_pad), np.float32)
    out[:H * W, :H * W] = m
    return out


def _lane_shift(x, s, fill, valid):
    """y[..., p] = x[..., p + s] where `valid`, else fill (plane flattened on lanes)."""
    hw = x.shape[-1]
    rolled = pltpu.roll(x, (-s) % hw, axis=x.ndim - 1)   # rolled[..., p] = x[..., p + s]
    return jnp.where(valid, rolled, fill)


def _build_masks(hw_lanes, hw_valid, W, w_radius, h_radius):
    """Hoisted boundary masks: built once per grid step and reused by every stencil
    (JAX does not CSE broadcast_in_dim, so rebuilding per shift is pure VALU waste)."""
    q = lax.broadcasted_iota(jnp.int32, (1, hw_lanes), 1)
    wq = q % W
    wmask, hmask = {}, {}
    for d in range(1, w_radius + 1):
        for s in (d, -d):
            wmask[s] = (wq + s >= 0) & (wq + s < W)
    for d in range(1, h_radius + 1):
        for s in (d * W, -d * W):
            hmask[s] = (q + s >= 0) & (q + s < hw_valid)
    return q, wmask, hmask


def _closing_pool(y, radius, W, op, wmask, hmask):
    """Separable (2r+1)^2 max/min pool over the flattened plane axis.
    Out-of-bounds neighbours are ignored (fill = self is a no-op for max/min)."""
    m = y
    for d in range(1, radius + 1):                       # w direction: lane shifts +-d
        for s in (d, -d):
            m = op(m, _lane_shift(y, s, y, wmask[s]))
    out = m
    for d in range(1, radius + 1):                       # h direction: lane shifts +-d*W
        for s in (d * W, -d * W):
            out = op(out, _lane_shift(m, s, m, hmask[s]))
    return out


def _box_mean_rolls(a, radius, W, wmask, hmask):
    """Separable zero-padded box mean (count_include_pad avg pool) via lane rolls.
    Fallback path for planes too large for the dense MXU box matrix."""
    s = a
    for d in range(1, radius + 1):
        for sh in (d, -d):
            s = s + _lane_shift(a, sh, 0.0, wmask[sh])
    out = s
    for d in range(1, radius + 1):
        for sh in (d * W, -d * W):
            out = out + _lane_shift(s, sh, 0.0, hmask[sh])
    return out * (1.0 / float((2 * radius + 1) ** 2))


def _threshold(a, local_mean, alpha, hw_valid, q):
    """Per-plane unbiased std (two-pass, like torch.std) -> adaptive threshold."""
    hw_lanes = a.shape[-1]
    mean = jnp.sum(a, axis=-1, keepdims=True) * (1.0 / float(hw_valid))
    d = a - mean
    if hw_lanes != hw_valid:                             # keep padded lanes out of the sum
        d = jnp.where(q < hw_valid, d, 0.0)
    var = jnp.sum(d * d, axis=-1, keepdims=True) * (1.0 / float(max(hw_valid - 1, 1)))
    return local_mean + alpha * jnp.sqrt(var)


# ----------------------------------------------------------------------------- kernels
def _ghost_kernel_mxu(box_ref, x_ref, o_ref, *, alpha, W, kernel_size, hw_valid):
    x = x_ref[...].astype(jnp.float32)                   # (tn, HW_pad), plane on lanes
    a = jnp.abs(x)
    r = kernel_size // 2
    q, wmask, hmask = _build_masks(x.shape[-1], hw_valid, W, r, r)

    # 5x5 avg pool (count_include_pad) as a bf16 MXU matmul against a banded 0/1
    # matrix.  The a = a_hi + a_lo split keeps ~f32 accuracy while feeding the MXU
    # pure bf16 operands (no f32-dot decomposition); the MXU is otherwise idle, and
    # the residual bf16 rounding of a_lo is second-order (well inside the test band).
    a_hi = a.astype(jnp.bfloat16)
    a_lo = (a - a_hi.astype(jnp.float32)).astype(jnp.bfloat16)
    box = box_ref[...]
    local_sum = (jnp.dot(a_hi, box, preferred_element_type=jnp.float32)
                 + jnp.dot(a_lo, box, preferred_element_type=jnp.float32))
    local_mean = local_sum * (1.0 / 25.0)

    thr = _threshold(a, local_mean, alpha, hw_valid, q)
    y = jnp.where(a > thr, x, 0.0)                       # mask * ori_x
    dil = _closing_pool(y, r, W, jnp.maximum, wmask, hmask)    # dilation (OOB ignored)
    ero = _closing_pool(dil, r, W, jnp.minimum, wmask, hmask)  # erosion  (OOB ignored)
    o_ref[...] = ero.astype(o_ref.dtype)


def _ghost_kernel_rolls(x_ref, o_ref, *, alpha, W, kernel_size, hw_valid):
    x = x_ref[...].astype(jnp.float32)
    a = jnp.abs(x)
    r = kernel_size // 2
    rad = max(2, r)                                      # box needs radius-2 masks
    q, wmask, hmask = _build_masks(x.shape[-1], hw_valid, W, rad, rad)
    local_mean = _box_mean_rolls(a, 2, W, wmask, hmask)  # 5x5 avg pool, zero padded
    thr = _threshold(a, local_mean, alpha, hw_valid, q)
    y = jnp.where(a > thr, x, 0.0)
    dil = _closing_pool(y, r, W, jnp.maximum, wmask, hmask)
    ero = _closing_pool(dil, r, W, jnp.minimum, wmask, hmask)
    o_ref[...] = ero.astype(o_ref.dtype)


# ----------------------------------------------------------------------------- wrapper
def ghost_suppressor(diff_frames, alpha=0.5, kernel_size=3):
    """diff_frames: [B, C, T, H, W] -> ghost-suppressed frames, same shape/dtype."""
    assert kernel_size % 2 == 1, "only odd morphological kernel sizes supported"
    B, C, T, H, W = diff_frames.shape
    N = B * C * T
    HW = H * W
    dtype = diff_frames.dtype
    itemsize = jnp.dtype(dtype).itemsize

    # ---- lane-dense layout: plane pixels on the lane axis, padded to 128 ----------
    HW_pad = max(128, _round_up(HW, 128))                # lane-dense stores + clean rolls

    # Dense MXU box filter only while the banded matmul stays cheaper than the
    # ~24-op/elem roll path on every generation (v5e breakeven is around HW ~ 512).
    use_mxu_box = HW_pad <= 512

    # ---- generation-aware VMEM budget ---------------------------------------------
    try:
        vmem_cap = int(pltpu.get_tpu_info().vmem_capacity_bytes)
    except Exception:                                    # non-TPU tracing / older jax
        vmem_cap = 128 * 1024 * 1024
    if vmem_cap <= 64 * 1024 * 1024:                     # v7x-class TC: leave headroom
        vmem_limit = 40 * 1024 * 1024
        target_block = 6 * 1024 * 1024
    else:                                                # v5e / v6e (128 MiB physical)
        vmem_limit = 64 * 1024 * 1024
        target_block = 8 * 1024 * 1024

    # ---- tile the plane axis: dtype-aware sublane tile, even grid, ~8 steps --------
    sublane = {1: 32, 2: 16}.get(itemsize, 8)            # (sublane, 128) min tile by dtype
    bytes_per_row = HW_pad * (4 * itemsize + 10 * 4)     # dbl-buffered in/out + f32 temps
    tn_cap = max(sublane, (target_block // bytes_per_row) // sublane * sublane)
    n_rows = _round_up(N, sublane)
    steps = max(pl.cdiv(n_rows, tn_cap),                 # steps forced by the VMEM budget
                min(8, n_rows // sublane))               # aim for >= 8 steps (DMA overlap)
    if steps > 1 and steps % 2:
        steps += 1                                       # even grid keeps v7x's 2 TCs busy
    tn = _round_up(pl.cdiv(N, steps), sublane)
    n_pad = steps * tn
    grid = (steps,)

    x = diff_frames.reshape(N, HW)                       # native dtype; upcast in-kernel
    if n_pad != N or HW_pad != HW:
        x = jnp.pad(x, ((0, n_pad - N), (0, HW_pad - HW)))   # zero rows/lanes: sliced off

    x_spec = pl.BlockSpec((tn, HW_pad), lambda n: (n, 0))
    out_spec = pl.BlockSpec((tn, HW_pad), lambda n: (n, 0))
    compiler_params = pltpu.CompilerParams(
        dimension_semantics=("parallel",),
        vmem_limit_bytes=vmem_limit,
    )
    kern_kwargs = dict(alpha=float(alpha), W=W, kernel_size=kernel_size, hw_valid=HW)

    n_elems = n_pad * HW_pad
    if use_mxu_box:
        flops = 4 * n_pad * HW_pad * HW_pad + 40 * n_elems   # 2 bf16 dots + VPU work
    else:
        flops = 60 * n_elems
    cost = pl.CostEstimate(
        flops=int(flops),
        transcendentals=int(n_pad),                      # ~one sqrt per plane
        bytes_accessed=int(2 * n_elems * itemsize
                           + (2 * HW_pad * HW_pad if use_mxu_box else 0)),
    )

    def call(single_buffer_box):
        if use_mxu_box:
            if single_buffer_box:
                # Block index never changes -> single VMEM buffer, no wasted copy.
                box_spec = pl.BlockSpec((HW_pad, HW_pad), lambda n: (0, 0),
                                        pipeline_mode=pl.Buffered(1))
            else:
                box_spec = pl.BlockSpec((HW_pad, HW_pad), lambda n: (0, 0))
            kern = functools.partial(_ghost_kernel_mxu, **kern_kwargs)
            in_specs, args = [box_spec, x_spec], (box, x)
        else:
            kern = functools.partial(_ghost_kernel_rolls, **kern_kwargs)
            in_specs, args = [x_spec], (x,)
        return pl.pallas_call(
            kern,
            out_shape=jax.ShapeDtypeStruct((n_pad, HW_pad), dtype),
            grid_spec=pltpu.PrefetchScalarGridSpec(
                num_scalar_prefetch=0,
                grid=grid,
                in_specs=in_specs,
                out_specs=out_spec,
            ),
            compiler_params=compiler_params,
            cost_estimate=cost,
        )(*args)

    if use_mxu_box:
        box = jnp.asarray(_box_matrix(H, W, 2, HW_pad), dtype=jnp.bfloat16)
        try:
            out = jax.block_until_ready(call(True))
        except Exception:        # this jax version rejects Buffered(1) on an input
            out = call(False)
    else:
        out = call(False)

    return out[:N, :HW].reshape(B, C, T, H, W)


# ----------------------------------------------------------------------------- reference
def _reference(diff_frames, alpha, kernel_size):
    """Pure-JAX reference mirroring the PyTorch semantics.  Also returns the
    per-pixel distance to the decision threshold |a - thr| (used to exclude
    float-rounding-level ties from the elementwise comparison)."""
    B, C, T, H, W = diff_frames.shape
    x = diff_frames.reshape(-1, H, W).astype(jnp.float32)
    a = jnp.abs(x)
    local_mean = lax.reduce_window(
        a, 0.0, lax.add, (1, 5, 5), (1, 1, 1),
        padding=((0, 0), (2, 2), (2, 2))) / 25.0
    mean = jnp.mean(a, axis=(1, 2), keepdims=True)
    var = jnp.sum((a - mean) ** 2, axis=(1, 2), keepdims=True) / max(H * W - 1, 1)
    thr = local_mean + alpha * jnp.sqrt(var)
    y = jnp.where(a > thr, x, 0.0)
    r = kernel_size // 2
    win, pad = (1, 2 * r + 1, 2 * r + 1), ((0, 0), (r, r), (r, r))
    dil = lax.reduce_window(y, -jnp.inf, lax.max, win, (1, 1, 1), padding=pad)
    ero = -lax.reduce_window(-dil, -jnp.inf, lax.max, win, (1, 1, 1), padding=pad)
    out = ero.reshape(diff_frames.shape).astype(diff_frames.dtype)
    margin = jnp.abs(a - thr).reshape(diff_frames.shape)
    return out, margin


if __name__ == "__main__":
    key = jax.random.PRNGKey(0)
    B, C, T, H, W = 2, 4, 8, 16, 16
    diff_frames = jax.random.normal(key, (B, C, T, H, W), dtype=jnp.float32)

    out = jax.block_until_ready(ghost_suppressor(diff_frames, alpha=0.5, kernel_size=3))
    assert out.shape == diff_frames.shape and out.dtype == diff_frames.dtype

    ref, margin = _reference(diff_frames, alpha=0.5, kernel_size=3)

    # `|x| > threshold` is discontinuous: pixels within a float-rounding band of the
    # threshold may legitimately flip between implementations, and a flip spreads over
    # the (2*ks - 1)^2 support of the closing.  Exclude only those pixels.
    ks = 3
    near = (margin < 1e-4).astype(jnp.float32).reshape(-1, H, W)
    spread = lax.reduce_window(
        near, 0.0, lax.max,
        (1, 2 * ks - 1, 2 * ks - 1), (1, 1, 1),
        padding=((0, 0), (ks - 1, ks - 1), (ks - 1, ks - 1))).reshape(diff_frames.shape)
    ok = jnp.logical_or(spread > 0, jnp.isclose(out, ref, atol=1e-5, rtol=1e-5))
    assert bool(jnp.all(ok)), "kernel output does not match the reference"
    print("KERNEL_OK")
</pallas_src>

<mosaic_0001>
module attributes {stable_mosaic.version = 11 : i64} {
  func.func @_ghost_kernel_mxu(%arg0: i32, %arg1: memref<256x256xbf16, #tpu.memory_space<vmem>>, %arg2: memref<8x256xf32, #tpu.memory_space<vmem>>, %arg3: memref<8x256xf32, #tpu.memory_space<vmem>>) attributes {dimension_semantics = [#tpu.dimension_semantics<parallel>], iteration_bounds = array<i64: 8>, scalar_prefetch = 0 : i64, scratch_operands = 0 : i64, tpu.core_type = #tpu.core_type<tc>, window_params = [{pipeline_mode = #tpu.pipeline_mode<synchronous>, transform_indices = @transform_0, window_bounds = array<i64: 256, 256>}, {transform_indices = @transform_1, window_bounds = array<i64: 8, 256>}, {transform_indices = @transform_2, window_bounds = array<i64: 8, 256>}]} {
    %c0 = arith.constant 0 : index
    %c0_0 = arith.constant 0 : index
    %0 = vector.load %arg2[%c0, %c0_0] : memref<8x256xf32, #tpu.memory_space<vmem>>, vector<8x256xf32>
    %1 = math.absf %0 : vector<8x256xf32>
    %2 = tpu.iota {dimensions = array<i32: 1>} : vector<1x256xi32>
    %c16_i32 = arith.constant 16 : i32
    %c0_i32 = arith.constant 0 : i32
    %3 = arith.cmpi eq, %c16_i32, %c0_i32 : i32
    %c1_i32 = arith.constant 1 : i32
    %4 = arith.select %3, %c1_i32, %c16_i32 : i32
    %5 = vector.broadcast %4 : i32 to vector<1x256xi32>
    %6 = arith.remsi %2, %5 : vector<1x256xi32>
    %c0_i32_1 = arith.constant 0 : i32
    %7 = vector.broadcast %c0_i32_1 : i32 to vector<1x256xi32>
    %8 = arith.cmpi ne, %6, %7 : vector<1x256xi32>
    %c0_i32_2 = arith.constant 0 : i32
    %9 = vector.broadcast %c0_i32_2 : i32 to vector<1x256xi32>
    %10 = arith.cmpi slt, %6, %9 : vector<1x256xi32>
    %c0_i32_3 = arith.constant 0 : i32
    %11 = arith.cmpi slt, %4, %c0_i32_3 : i32
    %12 = vector.broadcast %11 : i1 to vector<1x256xi1>
    %13 = vector.broadcast %12 : vector<1x256xi1> to vector<1x256xi1>
    %14 = arith.xori %10, %13 : vector<1x256xi1>
    %15 = arith.andi %14, %8 : vector<1x256xi1>
    %16 = vector.broadcast %4 : i32 to vector<1x256xi32>
    %17 = arith.addi %6, %16 : vector<1x256xi32>
    %18 = arith.select %15, %17, %6 : vector<1x256xi1>, vector<1x256xi32>
    %c1_i32_4 = arith.constant 1 : i32
    %19 = vector.broadcast %c1_i32_4 : i32 to vector<1x256xi32>
    %20 = arith.addi %18, %19 : vector<1x256xi32>
    %c0_i32_5 = arith.constant 0 : i32
    %21 = vector.broadcast %c0_i32_5 : i32 to vector<1x256xi32>
    %22 = arith.cmpi sge, %20, %21 : vector<1x256xi32>
    %c1_i32_6 = arith.constant 1 : i32
    %23 = vector.broadcast %c1_i32_6 : i32 to vector<1x256xi32>
    %24 = arith.addi %18, %23 : vector<1x256xi32>
    %c16_i32_7 = arith.constant 16 : i32
    %25 = vector.broadcast %c16_i32_7 : i32 to vector<1x256xi32>
    %26 = arith.cmpi slt, %24, %25 : vector<1x256xi32>
    %27 = arith.andi %22, %26 : vector<1x256xi1>
    %c-1_i32 = arith.constant -1 : i32
    %28 = vector.broadcast %c-1_i32 : i32 to vector<1x256xi32>
    %29 = arith.addi %18, %28 : vector<1x256xi32>
    %c0_i32_8 = arith.constant 0 : i32
    %30 = vector.broadcast %c0_i32_8 : i32 to vector<1x256xi32>
    %31 = arith.cmpi sge, %29, %30 : vector<1x256xi32>
    %c-1_i32_9 = arith.constant -1 : i32
    %32 = vector.broadcast %c-1_i32_9 : i32 to vector<1x256xi32>
    %33 = arith.addi %18, %32 : vector<1x256xi32>
    %c16_i32_10 = arith.constant 16 : i32
    %34 = vector.broadcast %c16_i32_10 : i32 to vector<1x256xi32>
    %35 = arith.cmpi slt, %33, %34 : vector<1x256xi32>
    %36 = arith.andi %31, %35 : vector<1x256xi1>
    %c16_i32_11 = arith.constant 16 : i32
    %37 = vector.broadcast %c16_i32_11 : i32 to vector<1x256xi32>
    %38 = arith.addi %2, %37 : vector<1x256xi32>
    %c0_i32_12 = arith.constant 0 : i32
    %39 = vector.broadcast %c0_i32_12 : i32 to vector<1x256xi32>
    %40 = arith.cmpi sge, %38, %39 : vector<1x256xi32>
    %c16_i32_13 = arith.constant 16 : i32
    %41 = vector.broadcast %c16_i32_13 : i32 to vector<1x256xi32>
    %42 = arith.addi %2, %41 : vector<1x256xi32>
    %c256_i32 = arith.constant 256 : i32
    %43 = vector.broadcast %c256_i32 : i32 to vector<1x256xi32>
    %44 = arith.cmpi slt, %42, %43 : vector<1x256xi32>
    %45 = arith.andi %40, %44 : vector<1x256xi1>
    %c-16_i32 = arith.constant -16 : i32
    %46 = vector.broadcast %c-16_i32 : i32 to vector<1x256xi32>
    %47 = arith.addi %2, %46 : vector<1x256xi32>
    %c0_i32_14 = arith.constant 0 : i32
    %48 = vector.broadcast %c0_i32_14 : i32 to vector<1x256xi32>
    %49 = arith.cmpi sge, %47, %48 : vector<1x256xi32>
    %c-16_i32_15 = arith.constant -16 : i32
    %50 = vector.broadcast %c-16_i32_15 : i32 to vector<1x256xi32>
    %51 = arith.addi %2, %50 : vector<1x256xi32>
    %c256_i32_16 = arith.constant 256 : i32
    %52 = vector.broadcast %c256_i32_16 : i32 to vector<1x256xi32>
    %53 = arith.cmpi slt, %51, %52 : vector<1x256xi32>
    %54 = arith.andi %49, %53 : vector<1x256xi1>
    %55 = arith.truncf %1 : vector<8x256xf32> to vector<8x256xbf16>
    %56 = arith.extf %55 : vector<8x256xbf16> to vector<8x256xf32>
    %57 = arith.subf %1, %56 : vector<8x256xf32>
    %58 = arith.truncf %57 : vector<8x256xf32> to vector<8x256xbf16>
    %c0_17 = arith.constant 0 : index
    %c0_18 = arith.constant 0 : index
    %59 = vector.load %arg1[%c0_17, %c0_18] : memref<256x256xbf16, #tpu.memory_space<vmem>>, vector<256x256xbf16>
    %cst = arith.constant dense<0.000000e+00> : vector<8x256xf32>
    %60 = tpu.matmul %55, %59, %cst {dimension_numbers = #tpu.dot_dimension_numbers<[1], [0], [0], [1], [0, 0, 1, 1], [], []>} : vector<8x256xbf16>, vector<256x256xbf16>, vector<8x256xf32> -> vector<8x256xf32>
    %cst_19 = arith.constant dense<0.000000e+00> : vector<8x256xf32>
    %61 = tpu.matmul %58, %59, %cst_19 {dimension_numbers = #tpu.dot_dimension_numbers<[1], [0], [0], [1], [0, 0, 1, 1], [], []>} : vector<8x256xbf16>, vector<256x256xbf16>, vector<8x256xf32> -> vector<8x256xf32>
    %62 = arith.addf %60, %61 : vector<8x256xf32>
    %cst_20 = arith.constant 4.000000e-02 : f32
    %63 = vector.broadcast %cst_20 : f32 to vector<8x256xf32>
    %64 = arith.mulf %62, %63 : vector<8x256xf32>
    %cst_21 = arith.constant dense<0.000000e+00> : vector<8xf32>
    %65 = vector.multi_reduction <add>, %1, %cst_21 [1] : vector<8x256xf32> to vector<8xf32>
    %66 = vector.shape_cast %65 : vector<8xf32> to vector<8x1xf32>
    %cst_22 = arith.constant 3.906250e-03 : f32
    %67 = vector.broadcast %cst_22 : f32 to vector<8x1xf32>
    %68 = arith.mulf %66, %67 : vector<8x1xf32>
    %69 = vector.broadcast %68 : vector<8x1xf32> to vector<8x256xf32>
    %70 = arith.subf %1, %69 : vector<8x256xf32>
    %71 = arith.mulf %70, %70 : vector<8x256xf32>
    %cst_23 = arith.constant dense<0.000000e+00> : vector<8xf32>
    %72 = vector.multi_reduction <add>, %71, %cst_23 [1] : vector<8x256xf32> to vector<8xf32>
    %73 = vector.shape_cast %72 : vector<8xf32> to vector<8x1xf32>
    %cst_24 = arith.constant 0.00392156886 : f32
    %74 = vector.broadcast %cst_24 : f32 to vector<8x1xf32>
    %75 = arith.mulf %73, %74 : vector<8x1xf32>
    %76 = math.sqrt %75 : vector<8x1xf32>
    %cst_25 = arith.constant 5.000000e-01 : f32
    %77 = vector.broadcast %cst_25 : f32 to vector<8x1xf32>
    %78 = arith.mulf %77, %76 : vector<8x1xf32>
    %79 = vector.broadcast %78 : vector<8x1xf32> to vector<8x256xf32>
    %80 = arith.addf %64, %79 : vector<8x256xf32>
    %81 = arith.cmpf ogt, %1, %80 : vector<8x256xf32>
    %cst_26 = arith.constant 0.000000e+00 : f32
    %82 = vector.broadcast %cst_26 : f32 to vector<8x256xf32>
    %83 = arith.select %81, %0, %82 : vector<8x256xi1>, vector<8x256xf32>
    %c255_i32 = arith.constant 255 : i32
    %84 = tpu.dynamic_rotate %83 by %c255_i32 dim 1 : vector<8x256xf32>, i32 -> vector<8x256xf32>
    %85 = vector.shape_cast %27 : vector<1x256xi1> to vector<1x256xi1>
    %86 = vector.broadcast %85 : vector<1x256xi1> to vector<8x256xi1>
    %87 = arith.select %86, %84, %83 : vector<8x256xi1>, vector<8x256xf32>
    %88 = arith.maximumf %83, %87 : vector<8x256xf32>
    %c1_i32_27 = arith.constant 1 : i32
    %89 = tpu.dynamic_rotate %83 by %c1_i32_27 dim 1 : vector<8x256xf32>, i32 -> vector<8x256xf32>
    %90 = vector.shape_cast %36 : vector<1x256xi1> to vector<1x256xi1>
    %91 = vector.broadcast %90 : vector<1x256xi1> to vector<8x256xi1>
    %92 = arith.select %91, %89, %83 : vector<8x256xi1>, vector<8x256xf32>
    %93 = arith.maximumf %88, %92 : vector<8x256xf32>
    %c240_i32 = arith.constant 240 : i32
    %94 = tpu.dynamic_rotate %93 by %c240_i32 dim 1 : vector<8x256xf32>, i32 -> vector<8x256xf32>
    %95 = vector.shape_cast %45 : vector<1x256xi1> to vector<1x256xi1>
    %96 = vector.broadcast %95 : vector<1x256xi1> to vector<8x256xi1>
    %97 = arith.select %96, %94, %93 : vector<8x256xi1>, vector<8x256xf32>
    %98 = arith.maximumf %93, %97 : vector<8x256xf32>
    %c16_i32_28 = arith.constant 16 : i32
    %99 = tpu.dynamic_rotate %93 by %c16_i32_28 dim 1 : vector<8x256xf32>, i32 -> vector<8x256xf32>
    %100 = vector.shape_cast %54 : vector<1x256xi1> to vector<1x256xi1>
    %101 = vector.broadcast %100 : vector<1x256xi1> to vector<8x256xi1>
    %102 = arith.select %101, %99, %93 : vector<8x256xi1>, vector<8x256xf32>
    %103 = arith.maximumf %98, %102 : vector<8x256xf32>
    %c255_i32_29 = arith.constant 255 : i32
    %104 = tpu.dynamic_rotate %103 by %c255_i32_29 dim 1 : vector<8x256xf32>, i32 -> vector<8x256xf32>
    %105 = vector.shape_cast %27 : vector<1x256xi1> to vector<1x256xi1>
    %106 = vector.broadcast %105 : vector<1x256xi1> to vector<8x256xi1>
    %107 = arith.select %106, %104, %103 : vector<8x256xi1>, vector<8x256xf32>
    %108 = arith.minimumf %103, %107 : vector<8x256xf32>
    %c1_i32_30 = arith.constant 1 : i32
    %109 = tpu.dynamic_rotate %103 by %c1_i32_30 dim 1 : vector<8x256xf32>, i32 -> vector<8x256xf32>
    %110 = vector.shape_cast %36 : vector<1x256xi1> to vector<1x256xi1>
    %111 = vector.broadcast %110 : vector<1x256xi1> to vector<8x256xi1>
    %112 = arith.select %111, %109, %103 : vector<8x256xi1>, vector<8x256xf32>
    %113 = arith.minimumf %108, %112 : vector<8x256xf32>
    %c240_i32_31 = arith.constant 240 : i32
    %114 = tpu.dynamic_rotate %113 by %c240_i32_31 dim 1 : vector<8x256xf32>, i32 -> vector<8x256xf32>
    %115 = vector.shape_cast %45 : vector<1x256xi1> to vector<1x256xi1>
    %116 = vector.broadcast %115 : vector<1x256xi1> to vector<8x256xi1>
    %117 = arith.select %116, %114, %113 : vector<8x256xi1>, vector<8x256xf32>
    %118 = arith.minimumf %113, %117 : vector<8x256xf32>
    %c16_i32_32 = arith.constant 16 : i32
    %119 = tpu.dynamic_rotate %113 by %c16_i32_32 dim 1 : vector<8x256xf32>, i32 -> vector<8x256xf32>
    %120 = vector.shape_cast %54 : vector<1x256xi1> to vector<1x256xi1>
    %121 = vector.broadcast %120 : vector<1x256xi1> to vector<8x256xi1>
    %122 = arith.select %121, %119, %113 : vector<8x256xi1>, vector<8x256xf32>
    %123 = arith.minimumf %118, %122 : vector<8x256xf32>
    %c0_33 = arith.constant 0 : index
    %c0_34 = arith.constant 0 : index
    %124 = vector.load %arg3[%c0_33, %c0_34] : memref<8x256xf32, #tpu.memory_space<vmem>>, vector<8x256xf32>
    tpu.vector_store %arg3[%c0_33, %c0_34], %123 {strides = array<i32>} : memref<8x256xf32, #tpu.memory_space<vmem>>, vector<8x256xf32>,
    return
  }
  func.func @transform_0(%arg0: i32) -> (i32, i32) {
    %c0_i32 = arith.constant 0 : i32
    %c0_i32_0 = arith.constant 0 : i32
    %c0_i32_1 = arith.constant 0 : i32
    return %c0_i32, %c0_i32_0 : i32, i32
  }
  func.func @transform_1(%arg0: i32) -> (i32, i32) {
    %c0_i32 = arith.constant 0 : i32
    %c0_i32_0 = arith.constant 0 : i32
    return %arg0, %c0_i32 : i32, i32
  }
  func.func @transform_2(%arg0: i32) -> (i32, i32) {
    %c0_i32 = arith.constant 0 : i32
    %c0_i32_0 = arith.constant 0 : i32
    return %arg0, %c0_i32 : i32, i32
  }
}

module attributes {stable_mosaic.version = 11 : i64} {
  func.func @_ghost_kernel_mxu(%arg0: i32, %arg1: memref<256x256xbf16, #tpu.memory_space<vmem>>, %arg2: memref<8x256xf32, #tpu.memory_space<vmem>>, %arg3: memref<8x256xf32, #tpu.memory_space<vmem>>) attributes {dimension_semantics = [#tpu.dimension_semantics<parallel>], iteration_bounds = array<i64: 8>, scalar_prefetch = 0 : i64, scratch_operands = 0 : i64, tpu.core_type = #tpu.core_type<tc>, window_params = [{pipeline_mode = #tpu.pipeline_mode<synchronous>, transform_indices = @transform_0, window_bounds = array<i64: 256, 256>}, {transform_indices = @transform_1, window_bounds = array<i64: 8, 256>}, {transform_indices = @transform_2, window_bounds = array<i64: 8, 256>}]} {
    %c0 = arith.constant 0 : index
    %c0_0 = arith.constant 0 : index
    %0 = vector.load %arg2[%c0, %c0_0] : memref<8x256xf32, #tpu.memory_space<vmem>>, vector<8x256xf32>
    %1 = math.absf %0 : vector<8x256xf32>
    %2 = tpu.iota {dimensions = array<i32: 1>} : vector<1x256xi32>
    %c16_i32 = arith.constant 16 : i32
    %c0_i32 = arith.constant 0 : i32
    %3 = arith.cmpi eq, %c16_i32, %c0_i32 : i32
    %c1_i32 = arith.constant 1 : i32
    %4 = arith.select %3, %c1_i32, %c16_i32 : i32
    %5 = vector.broadcast %4 : i32 to vector<1x256xi32>
    %6 = arith.remsi %2, %5 : vector<1x256xi32>
    %c0_i32_1 = arith.constant 0 : i32
    %7 = vector.broadcast %c0_i32_1 : i32 to vector<1x256xi32>
    %8 = arith.cmpi ne, %6, %7 : vector<1x256xi32>
    %c0_i32_2 = arith.constant 0 : i32
    %9 = vector.broadcast %c0_i32_2 : i32 to vector<1x256xi32>
    %10 = arith.cmpi slt, %6, %9 : vector<1x256xi32>
    %c0_i32_3 = arith.constant 0 : i32
    %11 = arith.cmpi slt, %4, %c0_i32_3 : i32
    %12 = vector.broadcast %11 : i1 to vector<1x256xi1>
    %13 = vector.broadcast %12 : vector<1x256xi1> to vector<1x256xi1>
    %14 = arith.xori %10, %13 : vector<1x256xi1>
    %15 = arith.andi %14, %8 : vector<1x256xi1>
    %16 = vector.broadcast %4 : i32 to vector<1x256xi32>
    %17 = arith.addi %6, %16 : vector<1x256xi32>
    %18 = arith.select %15, %17, %6 : vector<1x256xi1>, vector<1x256xi32>
    %c1_i32_4 = arith.constant 1 : i32
    %19 = vector.broadcast %c1_i32_4 : i32 to vector<1x256xi32>
    %20 = arith.addi %18, %19 : vector<1x256xi32>
    %c0_i32_5 = arith.constant 0 : i32
    %21 = vector.broadcast %c0_i32_5 : i32 to vector<1x256xi32>
    %22 = arith.cmpi sge, %20, %21 : vector<1x256xi32>
    %c1_i32_6 = arith.constant 1 : i32
    %23 = vector.broadcast %c1_i32_6 : i32 to vector<1x256xi32>
    %24 = arith.addi %18, %23 : vector<1x256xi32>
    %c16_i32_7 = arith.constant 16 : i32
    %25 = vector.broadcast %c16_i32_7 : i32 to vector<1x256xi32>
    %26 = arith.cmpi slt, %24, %25 : vector<1x256xi32>
    %27 = arith.andi %22, %26 : vector<1x256xi1>
    %c-1_i32 = arith.constant -1 : i32
    %28 = vector.broadcast %c-1_i32 : i32 to vector<1x256xi32>
    %29 = arith.addi %18, %28 : vector<1x256xi32>
    %c0_i32_8 = arith.constant 0 : i32
    %30 = vector.broadcast %c0_i32_8 : i32 to vector<1x256xi32>
    %31 = arith.cmpi sge, %29, %30 : vector<1x256xi32>
    %c-1_i32_9 = arith.constant -1 : i32
    %32 = vector.broadcast %c-1_i32_9 : i32 to vector<1x256xi32>
    %33 = arith.addi %18, %32 : vector<1x256xi32>
    %c16_i32_10 = arith.constant 16 : i32
    %34 = vector.broadcast %c16_i32_10 : i32 to vector<1x256xi32>
    %35 = arith.cmpi slt, %33, %34 : vector<1x256xi32>
    %36 = arith.andi %31, %35 : vector<1x256xi1>
    %c16_i32_11 = arith.constant 16 : i32
    %37 = vector.broadcast %c16_i32_11 : i32 to vector<1x256xi32>
    %38 = arith.addi %2, %37 : vector<1x256xi32>
    %c0_i32_12 = arith.constant 0 : i32
    %39 = vector.broadcast %c0_i32_12 : i32 to vector<1x256xi32>
    %40 = arith.cmpi sge, %38, %39 : vector<1x256xi32>
    %c16_i32_13 = arith.constant 16 : i32
    %41 = vector.broadcast %c16_i32_13 : i32 to vector<1x256xi32>
    %42 = arith.addi %2, %41 : vector<1x256xi32>
    %c256_i32 = arith.constant 256 : i32
    %43 = vector.broadcast %c256_i32 : i32 to vector<1x256xi32>
    %44 = arith.cmpi slt, %42, %43 : vector<1x256xi32>
    %45 = arith.andi %40, %44 : vector<1x256xi1>
    %c-16_i32 = arith.constant -16 : i32
    %46 = vector.broadcast %c-16_i32 : i32 to vector<1x256xi32>
    %47 = arith.addi %2, %46 : vector<1x256xi32>
    %c0_i32_14 = arith.constant 0 : i32
    %48 = vector.broadcast %c0_i32_14 : i32 to vector<1x256xi32>
    %49 = arith.cmpi sge, %47, %48 : vector<1x256xi32>
    %c-16_i32_15 = arith.constant -16 : i32
    %50 = vector.broadcast %c-16_i32_15 : i32 to vector<1x256xi32>
    %51 = arith.addi %2, %50 : vector<1x256xi32>
    %c256_i32_16 = arith.constant 256 : i32
    %52 = vector.broadcast %c256_i32_16 : i32 to vector<1x256xi32>
    %53 = arith.cmpi slt, %51, %52 : vector<1x256xi32>
    %54 = arith.andi %49, %53 : vector<1x256xi1>
    %55 = arith.truncf %1 : vector<8x256xf32> to vector<8x256xbf16>
    %56 = arith.extf %55 : vector<8x256xbf16> to vector<8x256xf32>
    %57 = arith.subf %1, %56 : vector<8x256xf32>
    %58 = arith.truncf %57 : vector<8x256xf32> to vector<8x256xbf16>
    %c0_17 = arith.constant 0 : index
    %c0_18 = arith.constant 0 : index
    %59 = vector.load %arg1[%c0_17, %c0_18] : memref<256x256xbf16, #tpu.memory_space<vmem>>, vector<256x256xbf16>
    %cst = arith.constant dense<0.000000e+00> : vector<8x256xf32>
    %60 = tpu.matmul %55, %59, %cst {dimension_numbers = #tpu.dot_dimension_numbers<[1], [0], [0], [1], [0, 0, 1, 1], [], []>} : vector<8x256xbf16>, vector<256x256xbf16>, vector<8x256xf32> -> vector<8x256xf32>
    %cst_19 = arith.constant dense<0.000000e+00> : vector<8x256xf32>
    %61 = tpu.matmul %58, %59, %cst_19 {dimension_numbers = #tpu.dot_dimension_numbers<[1], [0], [0], [1], [0, 0, 1, 1], [], []>} : vector<8x256xbf16>, vector<256x256xbf16>, vector<8x256xf32> -> vector<8x256xf32>
    %62 = arith.addf %60, %61 : vector<8x256xf32>
    %cst_20 = arith.constant 4.000000e-02 : f32
    %63 = vector.broadcast %cst_20 : f32 to vector<8x256xf32>
    %64 = arith.mulf %62, %63 : vector<8x256xf32>
    %cst_21 = arith.constant dense<0.000000e+00> : vector<8xf32>
    %65 = vector.multi_reduction <add>, %1, %cst_21 [1] : vector<8x256xf32> to vector<8xf32>
    %66 = vector.shape_cast %65 : vector<8xf32> to vector<8x1xf32>
    %cst_22 = arith.constant 3.906250e-03 : f32
    %67 = vector.broadcast %cst_22 : f32 to vector<8x1xf32>
    %68 = arith.mulf %66, %67 : vector<8x1xf32>
    %69 = vector.broadcast %68 : vector<8x1xf32> to vector<8x256xf32>
    %70 = arith.subf %1, %69 : vector<8x256xf32>
    %71 = arith.mulf %70, %70 : vector<8x256xf32>
    %cst_23 = arith.constant dense<0.000000e+00> : vector<8xf32>
    %72 = vector.multi_reduction <add>, %71, %cst_23 [1] : vector<8x256xf32> to vector<8xf32>
    %73 = vector.shape_cast %72 : vector<8xf32> to vector<8x1xf32>
    %cst_24 = arith.constant 0.00392156886 : f32
    %74 = vector.broadcast %cst_24 : f32 to vector<8x1xf32>
    %75 = arith.mulf %73, %74 : vector<8x1xf32>
    %76 = math.sqrt %75 : vector<8x1xf32>
    %cst_25 = arith.constant 5.000000e-01 : f32
    %77 = vector.broadcast %cst_25 : f32 to vector<8x1xf32>
    %78 = arith.mulf %77, %76 : vector<8x1xf32>
    %79 = vector.broadcast %78 : vector<8x1xf32> to vector<8x256xf32>
    %80 = arith.addf %64, %79 : vector<8x256xf32>
    %81 = arith.cmpf ogt, %1, %80 : vector<8x256xf32>
    %cst_26 = arith.constant 0.000000e+00 : f32
    %82 = vector.broadcast %cst_26 : f32 to vector<8x256xf32>
    %83 = arith.select %81, %0, %82 : vector<8x256xi1>, vector<8x256xf32>
    %c255_i32 = arith.constant 255 : i32
    %84 = tpu.dynamic_rotate %83 by %c255_i32 dim 1 : vector<8x256xf32>, i32 -> vector<8x256xf32>
    %85 = vector.shape_cast %27 : vector<1x256xi1> to vector<1x256xi1>
    %86 = vector.broadcast %85 : vector<1x256xi1> to vector<8x256xi1>
    %87 = arith.select %86, %84, %83 : vector<8x256xi1>, vector<8x256xf32>
    %88 = arith.maximumf %83, %87 : vector<8x256xf32>
    %c1_i32_27 = arith.constant 1 : i32
    %89 = tpu.dynamic_rotate %83 by %c1_i32_27 dim 1 : vector<8x256xf32>, i32 -> vector<8x256xf32>
    %90 = vector.shape_cast %36 : vector<1x256xi1> to vector<1x256xi1>
    %91 = vector.broadcast %90 : vector<1x256xi1> to vector<8x256xi1>
    %92 = arith.select %91, %89, %83 : vector<8x256xi1>, vector<8x256xf32>
    %93 = arith.maximumf %88, %92 : vector<8x256xf32>
    %c240_i32 = arith.constant 240 : i32
    %94 = tpu.dynamic_rotate %93 by %c240_i32 dim 1 : vector<8x256xf32>, i32 -> vector<8x256xf32>
    %95 = vector.shape_cast %45 : vector<1x256xi1> to vector<1x256xi1>
    %96 = vector.broadcast %95 : vector<1x256xi1> to vector<8x256xi1>
    %97 = arith.select %96, %94, %93 : vector<8x256xi1>, vector<8x256xf32>
    %98 = arith.maximumf %93, %97 : vector<8x256xf32>
    %c16_i32_28 = arith.constant 16 : i32
    %99 = tpu.dynamic_rotate %93 by %c16_i32_28 dim 1 : vector<8x256xf32>, i32 -> vector<8x256xf32>
    %100 = vector.shape_cast %54 : vector<1x256xi1> to vector<1x256xi1>
    %101 = vector.broadcast %100 : vector<1x256xi1> to vector<8x256xi1>
    %102 = arith.select %101, %99, %93 : vector<8x256xi1>, vector<8x256xf32>
    %103 = arith.maximumf %98, %102 : vector<8x256xf32>
    %c255_i32_29 = arith.constant 255 : i32
    %104 = tpu.dynamic_rotate %103 by %c255_i32_29 dim 1 : vector<8x256xf32>, i32 -> vector<8x256xf32>
    %105 = vector.shape_cast %27 : vector<1x256xi1> to vector<1x256xi1>
    %106 = vector.broadcast %105 : vector<1x256xi1> to vector<8x256xi1>
    %107 = arith.select %106, %104, %103 : vector<8x256xi1>, vector<8x256xf32>
    %108 = arith.minimumf %103, %107 : vector<8x256xf32>
    %c1_i32_30 = arith.constant 1 : i32
    %109 = tpu.dynamic_rotate %103 by %c1_i32_30 dim 1 : vector<8x256xf32>, i32 -> vector<8x256xf32>
    %110 = vector.shape_cast %36 : vector<1x256xi1> to vector<1x256xi1>
    %111 = vector.broadcast %110 : vector<1x256xi1> to vector<8x256xi1>
    %112 = arith.select %111, %109, %103 : vector<8x256xi1>, vector<8x256xf32>
    %113 = arith.minimumf %108, %112 : vector<8x256xf32>
    %c240_i32_31 = arith.constant 240 : i32
    %114 = tpu.dynamic_rotate %113 by %c240_i32_31 dim 1 : vector<8x256xf32>, i32 -> vector<8x256xf32>
    %115 = vector.shape_cast %45 : vector<1x256xi1> to vector<1x256xi1>
    %116 = vector.broadcast %115 : vector<1x256xi1> to vector<8x256xi1>
    %117 = arith.select %116, %114, %113 : vector<8x256xi1>, vector<8x256xf32>
    %118 = arith.minimumf %113, %117 : vector<8x256xf32>
    %c16_i32_32 = arith.constant 16 : i32
    %119 = tpu.dynamic_rotate %113 by %c16_i32_32 dim 1 : vector<8x256xf32>, i32 -> vector<8x256xf32>
    %120 = vector.shape_cast %54 : vector<1x256xi1> to vector<1x256xi1>
    %121 = vector.broadcast %120 : vector<1x256xi1> to vector<8x256xi1>
    %122 = arith.select %121, %119, %113 : vector<8x256xi1>, vector<8x256xf32>
    %123 = arith.minimumf %118, %122 : vector<8x256xf32>
    %c0_33 = arith.constant 0 : index
    %c0_34 = arith.constant 0 : index
    %124 = vector.load %arg3[%c0_33, %c0_34] : memref<8x256xf32, #tpu.memory_space<vmem>>, vector<8x256xf32>
    tpu.vector_store %arg3[%c0_33, %c0_34], %123 {strides = array<i32>} : memref<8x256xf32, #tpu.memory_space<vmem>>, vector<8x256xf32>,
    return
  }
  func.func @transform_0(%arg0: i32) -> (i32, i32) {
    %c0_i32 = arith.constant 0 : i32
    %c0_i32_0 = arith.constant 0 : i32
    %c0_i32_1 = arith.constant 0 : i32
    return %c0_i32, %c0_i32_0 : i32, i32
  }
  func.func @transform_1(%arg0: i32) -> (i32, i32) {
    %c0_i32 = arith.constant 0 : i32
    %c0_i32_0 = arith.constant 0 : i32
    return %arg0, %c0_i32 : i32, i32
  }
  func.func @transform_2(%arg0: i32) -> (i32, i32) {
    %c0_i32 = arith.constant 0 : i32
    %c0_i32_0 = arith.constant 0 : i32
    return %arg0, %c0_i32 : i32, i32
  }
}

</mosaic_0001>

<llo_original>
// kernel: tpu_custom_call.1
$region0: #{tpu_custom_call.1}
  #allocation0 [shape = 'u32[]', space=smem, size = 0x4, offset = 0x4, fixed_abs, tag = 'smem constant byte address 0x4 - core index']
  #allocation1 [shape = 'u32[144,128]{1,0:T(1,128)}', space=vmem, size = 0x12000, scoped, tag = 'internal scratch']
  %s0 = inlined_call_operand.hbm [shape: bf16[256,256], index: 0, kind: input, shape index: {}]
  %s1 = inlined_call_operand.hbm [shape: f32[64,256], index: 1, kind: input, shape index: {}]
  %s2 = inlined_call_operand.hbm [shape: f32[64,256], index: 2, kind: output, shape index: {}]
  %s3 = sld [smem:[#allocation0]]
  $region49: #{tpu_custom_call.1} parent=0
    _
  %s5 = ssub.s32 1, %s3
  %s6 = scalar_select 0, %s5, %s3
  $region1: #{tpu_custom_call.1} parent=0
    #allocation2 [shape = 'u8[131072]{0}', space=vmem, size = 0x20000, scoped, tag = 'input window, operand 0, single buffered']
    #allocation3 [shape = 's32[2]{0}', space=sflag, size = 0x8, scoped, tag = 'scoped memory for tpu_custom_call.1']
    #allocation4 [shape = 's32[2]{0}', space=sflag, size = 0x8, scoped, tag = 'scoped memory for tpu_custom_call.1']
    #allocation5 [shape = 'u8[16384]{0}', space=vmem, size = 0x4000, scoped, tag = 'input window, operand 1']
    #allocation6 [shape = 's32[2]{0}', space=sflag, size = 0x8, scoped, tag = 'scoped memory for tpu_custom_call.1']
    #allocation7 [shape = 'u8[16384]{0}', space=vmem, size = 0x4000, scoped, tag = 'output window, operand 0']
    %7 = vsyncpa [#allocation3], 0
    %8 = vsyncpa [#allocation6], 0
    %s9 = scalar_lea.sflag [#allocation6], 1
    %10 = vsyncpa %s9, 0
    %11 = vsyncpa [#allocation4], 0
    %s12 = scalar_lea.sflag [#allocation4], 1
    %13 = vsyncpa %s12, 0
    loop: start=0, step=1, limit=10
    $region2: #{tpu_custom_call.1} parent=1 // loop_pre_header
      _
    $region3: #{tpu_custom_call.1} parent=1 // loop_header
      %s15 = sphi 0, %s19
      %p16 = scmp.ge.s32.totalorder %s15, 10
      %s23 = sphi 0, %s23
      %s25 = sphi 0, %s23
      %s26 = sphi 0, %s25
      %s40 = sphi 0, %s26
      %s46 = sphi 0, %s48
      %s49 = sphi 0, %s46
      %s50 = sphi 0, %s49
      %s66 = sphi 0, %s50
      %s72 = sphi 0, %s74
      %s75 = sphi 0, %s72
      %s76 = sphi 0, %s75
      %s92 = sphi 0, %s76
    $region4: #{tpu_custom_call.1} parent=1 // loop_header_branch
      %18 = sbr.rel (%p16) target = $region8
    $region5: #{tpu_custom_call.1} parent=1 // loop_body
      %s20 = ssub.s32 %s15, 1
      %s21 = ssub.s32 %s15, 2
      %s22 = sadd.s32 %s15, 1
      %s24 = sadd.s32 %s23, 1
      %p27 = scmp.eq.s32.totalorder %s15, 7
      %p28 = scmp.ne.s32.totalorder %s23, %s25
      %p29 = scmp.eq.s32.totalorder %s15, 0
      %p30 = por %p28, %p29
      %p31 = scmp.ne.s32.totalorder %s23, %s25
      %p32 = scmp.eq.s32.totalorder %s20, 7
      %p33 = por %p31, %p32
      %p34 = scmp.ne.s32.totalorder %s25, %s26
      %p35 = scmp.eq.s32.totalorder %s20, 0
      %p36 = por %p34, %p35
      %p37 = scmp.ne.s32.totalorder %s25, %s26
      %p38 = scmp.eq.s32.totalorder %s21, 7
      %p39 = por %p37, %p38
      %p41 = scmp.ne.s32.totalorder %s26, %s40
      %p42 = scmp.eq.s32.totalorder %s21, 0
      %p43 = por %p41, %p42
      %s44 = ssub.s32 %s15, %s22
      %p45 = scmp.eq.s32.totalorder %s44, 0
      %s47 = sadd.s32 %s46, 1
      %s48 = scalar_select %p45, %s46, %s47
      %p51 = pneg %p45
      %p52 = scmp.eq.s32.totalorder %s15, 7
      %p53 = por %p51, %p52
      %p54 = scmp.ne.s32.totalorder %s46, %s49
      %p55 = scmp.eq.s32.totalorder %s15, 0
      %p56 = por %p54, %p55
      %p57 = scmp.ne.s32.totalorder %s46, %s49
      %p58 = scmp.eq.s32.totalorder %s20, 7
      %p59 = por %p57, %p58
      %p60 = scmp.ne.s32.totalorder %s49, %s50
      %p61 = scmp.eq.s32.totalorder %s20, 0
      %p62 = por %p60, %p61
      %p63 = scmp.ne.s32.totalorder %s49, %s50
      %p64 = scmp.eq.s32.totalorder %s21, 7
      %p65 = por %p63, %p64
      %p67 = scmp.ne.s32.totalorder %s50, %s66
      %p68 = scmp.eq.s32.totalorder %s21, 0
      %p69 = por %p67, %p68
      %s70 = ssub.s32 %s15, %s22
      %p71 = scmp.eq.s32.totalorder %s70, 0
      %s73 = sadd.s32 %s72, 1
      %s74 = scalar_select %p71, %s72, %s73
      %p77 = pneg %p71
      %p78 = scmp.eq.s32.totalorder %s15, 7
      %p79 = por %p77, %p78
      %p80 = scmp.ne.s32.totalorder %s72, %s75
      %p81 = scmp.eq.s32.totalorder %s15, 0
      %p82 = por %p80, %p81
      %p83 = scmp.ne.s32.totalorder %s72, %s75
      %p84 = scmp.eq.s32.totalorder %s20, 7
      %p85 = por %p83, %p84
      %p86 = scmp.ne.s32.totalorder %s75, %s76
      %p87 = scmp.eq.s32.totalorder %s20, 0
      %p88 = por %p86, %p87
      %p89 = scmp.ne.s32.totalorder %s75, %s76
      %p90 = scmp.eq.s32.totalorder %s21, 7
      %p91 = por %p89, %p90
      %p93 = scmp.ne.s32.totalorder %s76, %s92
      %p94 = scmp.eq.s32.totalorder %s21, 0
      %p95 = por %p93, %p94
      %p96 = scmp.le.s32.totalorder 1, %s15
      %p97 = scmp.lt.s32.totalorder %s15, 9
      %p98 = pnand %p96, %p97
      %p99 = pneg %p98
      // Predicated region
      $region9: #{tpu_custom_call.1} parent=5 // pred_check
        _
      $region10: #{tpu_custom_call.1} parent=5 // pred_check_branch
        %101 = sbr.rel (%p98) target = $region12
      $region11: #{tpu_custom_call.1} parent=5 // pred_region
        %s102 = ssub.s32 %s15, 1
        // Predicated region
        $region13: #{tpu_custom_call.1} parent=11 // pred_check
          %p103 = pneg %p36
        $region14: #{tpu_custom_call.1} parent=11 // pred_check_branch
          %105 = sbr.rel (%p103) target = $region16
        $region15: #{tpu_custom_call.1} parent=11 // pred_region
          %s107 = ssub.s32 4096, 4096
          %108 = vsyncadd [#allocation3], %s107
          %s109 = sshll.u32 [#allocation2], 4
          %s110 = int_to_ptr.vmem [resolvable:$true] %s109
          %115 = dma.hbm_to_vmem [thread:$0]  %s0, 4096, %s110, [#allocation3], 128, 128, 8
        $region16: #{tpu_custom_call.1} parent=11 // pred_fallthru
          _
      $region12: #{tpu_custom_call.1} parent=5 // pred_fallthru
        _
      %p116 = scmp.lt.s32.totalorder %s15, 8
      // Predicated region
      $region17: #{tpu_custom_call.1} parent=5 // pred_check
        %p117 = pneg %p116
      $region18: #{tpu_custom_call.1} parent=5 // pred_check_branch
        %119 = sbr.rel (%p117) target = $region20
      $region19: #{tpu_custom_call.1} parent=5 // pred_region
        // Predicated region
        $region21: #{tpu_custom_call.1} parent=19 // pred_check
          %p120 = pneg %p56
        $region22: #{tpu_custom_call.1} parent=19 // pred_check_branch
          %122 = sbr.rel (%p120) target = $region24
        $region23: #{tpu_custom_call.1} parent=19 // pred_region
          %s123 = sand.u32 %s46, 1
          %s124 = scalar_lea.sflag [#allocation6], %s123
          %s125 = sand.u32 %s46, 1
          %s126 = smul.addr %s125, 16
          %s127 = scalar_lea.vmem [#allocation5], %s126
          %s129 = ssub.s32 256, 256
          %130 = vsyncadd %s124, %s129
          %s131 = smul.addr %s15, 2
          %s132 = smul.addr %s131, 128
          %s133 = scalar_lea.hbm %s1, %s132
          %s135 = sshll.u32 %s127, 4
          %s136 = int_to_ptr.vmem [resolvable:$true] %s135
          %138 = dma.hbm_to_vmem [thread:$0]  %s133, 256, %s136, %s124
        $region24: #{tpu_custom_call.1} parent=19 // pred_fallthru
          _
      $region20: #{tpu_custom_call.1} parent=5 // pred_fallthru
        _
      %p139 = scmp.le.s32.totalorder 1, %s15
      %p140 = scmp.lt.s32.totalorder %s15, 9
      %p141 = pnand %p139, %p140
      %p142 = pneg %p141
      // Predicated region
      $region25: #{tpu_custom_call.1} parent=5 // pred_check
        _
      $region26: #{tpu_custom_call.1} parent=5 // pred_check_branch
        %144 = sbr.rel (%p141) target = $region28
      $region27: #{tpu_custom_call.1} parent=5 // pred_region
        %s145 = ssub.s32 %s15, 1
        // Predicated region
        $region29: #{tpu_custom_call.1} parent=27 // pred_check
          %p146 = pneg %p36
        $region30: #{tpu_custom_call.1} parent=27 // pred_check_branch
          %148 = sbr.rel (%p146) target = $region32
        $region31: #{tpu_custom_call.1} parent=27 // pred_region
          %149 = dma.done [#allocation3], 4096
        $region32: #{tpu_custom_call.1} parent=27 // pred_fallthru
          _
        %s150 = sand.u32 %s49, 1
        %s151 = scalar_lea.sflag [#allocation6], %s150
        %s152 = sand.u32 %s49, 1
        %s153 = smul.addr %s152, 16
        %s154 = scalar_lea.vmem [#allocation5], %s153
        // Predicated region
        $region33: #{tpu_custom_call.1} parent=27 // pred_check
          %p155 = pneg %p62
        $region34: #{tpu_custom_call.1} parent=27 // pred_check_branch
          %157 = sbr.rel (%p155) target = $region36
        $region35: #{tpu_custom_call.1} parent=27 // pred_region
          %158 = dma.done %s151, 256
        $region36: #{tpu_custom_call.1} parent=27 // pred_fallthru
          _
        %p159 = pneg %p36
        %p160 = pneg %p33
        %s161 = sand.u32 %s49, 1
        %s162 = scalar_lea.sflag [#allocation6], %s161
        %s163 = sand.u32 %s49, 1
        %s164 = smul.addr %s163, 16
        %s165 = scalar_lea.vmem [#allocation5], %s164
        %p166 = pneg %p62
        %p167 = pneg %p59
        %p168 = pneg %p88
        %p169 = pneg %p85
        %s170 = sand.u32 %s75, 1
        %s171 = scalar_lea.sflag [#allocation4], %s170
        %s172 = sand.u32 %s75, 1
        %s173 = smul.addr %s172, 16
        %s174 = scalar_lea.vmem [#allocation7], %s173
        %v175 = vld [vmem:[%s154] sm:$0xff]
        %v176 = vld [vmem:[%s154 + $0x8] sm:$0xff]
        %v177 = vand.u32 2147483647, %v175
        %v178 = vand.u32 2147483647, %v176
        %v179 = vlaneseq
        %v180 = vand.u32 %v179, 127
        %v181 = vadd.s32 %v180, 128
        %vm182 = vcmp.lt.s32.totalorder %v180, 0
        %v183 = vsub.s32 0, %v180
        %v184 = vsel %vm182, %v183, %v180
        %v185 = vshrl.u32 %v184, 4
        %v186 = vand.u32 %v184, 15
        %v187 = vsub.s32 0, %v186
        %v188 = vsel %vm182, %v187, %v186
        %vm189 = vcmp.lt.s32.totalorder %v181, 0
        %v190 = vsub.s32 0, %v181
        %v191 = vsel %vm189, %v190, %v181
        %v192 = vshrl.u32 %v191, 4
        %v193 = vand.u32 %v191, 15
        %v194 = vsub.s32 0, %v193
        %v195 = vsel %vm189, %v194, %v193
        %vm196 = vcmp.ne.s32.totalorder %v188, 0
        %vm197 = vcmp.ne.s32.totalorder %v195, 0
        %vm198 = vcmp.lt.s32.totalorder %v188, 0
        %vm199 = vcmp.lt.s32.totalorder %v195, 0
        %vm200 = vmand %vm198, %vm196
        %vm201 = vmand %vm199, %vm197
        %v202 = vadd.s32 %v188, 16
        %v203 = vadd.s32 %v195, 16
        %v204 = vsel %vm200, %v202, %v188
        %v205 = vsel %vm201, %v203, %v195
        %v206 = vadd.s32 %v204, 1
        %v207 = vadd.s32 %v205, 1
        %vm208 = vcmp.ge.s32.totalorder %v206, 0
        %vm209 = vcmp.ge.s32.totalorder %v207, 0
        %vm210 = vcmp.lt.s32.totalorder %v206, 16
        %vm211 = vcmp.lt.s32.totalorder %v207, 16
        %vm212 = vmand %vm208, %vm210
        %vm213 = vmand %vm209, %vm211
        %v214 = vadd.s32 %v204, 4294967295
        %v215 = vadd.s32 %v205, 4294967295
        %vm216 = vcmp.ge.s32.totalorder %v214, 0
        %vm217 = vcmp.ge.s32.totalorder %v215, 0
        %vm218 = vcmp.lt.s32.totalorder %v214, 16
        %vm219 = vcmp.lt.s32.totalorder %v215, 16
        %vm220 = vmand %vm216, %vm218
        %vm221 = vmand %vm217, %vm219
        %v222 = vadd.s32 %v180, 16
        %v223 = vadd.s32 %v181, 16
        %vm224 = vcmp.ge.s32.totalorder %v222, 0
        %vm225 = vcmp.ge.s32.totalorder %v223, 0
        %vm226 = vcmp.lt.s32.totalorder %v222, 256
        %vm227 = vcmp.lt.s32.totalorder %v223, 256
        %vm228 = vmand %vm224, %vm226
        %vm229 = vmand %vm225, %vm227
        %v230 = vadd.s32 %v180, 4294967280
        %v231 = vadd.s32 %v181, 4294967280
        %vm232 = vcmp.ge.s32.totalorder %v230, 0
        %vm233 = vcmp.ge.s32.totalorder %v231, 0
        %vm234 = vcmp.lt.s32.totalorder %v230, 256
        %vm235 = vcmp.lt.s32.totalorder %v231, 256
        %vm236 = vmand %vm232, %vm234
        %vm237 = vmand %vm233, %vm235
        %v238 = vpack.c.bf16 %v177, %v177
        %v239 = vpack.c.bf16 %v178, %v178
        %v240 = vunpack.c.l.bf16 %v238
        %v241 = vunpack.c.l.bf16 %v239
        %v242 = vsub.f32 %v177, %v240
        %v243 = vsub.f32 %v178, %v241
        %v244 = vpack.c.bf16 %v242, %v242
        %v245 = vpack.c.bf16 %v243, %v243
        %v246 = vld [vmem:[#allocation2] sm:$0xff]
        %v247 = vld [vmem:[#allocation2 + $0x8] sm:$0xff]
        %v248 = vld [vmem:[#allocation2 + $0x10] sm:$0xff]
        %v249 = vld [vmem:[#allocation2 + $0x18] sm:$0xff]
        %v250 = vld [vmem:[#allocation2 + $0x20] sm:$0xff]
        %v251 = vld [vmem:[#allocation2 + $0x28] sm:$0xff]
        %v252 = vld [vmem:[#allocation2 + $0x30] sm:$0xff]
        %v253 = vld [vmem:[#allocation2 + $0x38] sm:$0xff]
        %v254 = vld [vmem:[#allocation2 + $0x40] sm:$0xff]
        %v255 = vld [vmem:[#allocation2 + $0x48] sm:$0xff]
        %v256 = vld [vmem:[#allocation2 + $0x50] sm:$0xff]
        %v257 = vld [vmem:[#allocation2 + $0x58] sm:$0xff]
        %v258 = vld [vmem:[#allocation2 + $0x60] sm:$0xff]
        %v259 = vld [vmem:[#allocation2 + $0x68] sm:$0xff]
        %v260 = vld [vmem:[#allocation2 + $0x70] sm:$0xff]
        %v261 = vld [vmem:[#allocation2 + $0x78] sm:$0xff]
        %v262 = vld [vmem:[#allocation2 + $0x80] sm:$0xff]
        %v263 = vld [vmem:[#allocation2 + $0x88] sm:$0xff]
        %v264 = vld [vmem:[#allocation2 + $0x90] sm:$0xff]
        %v265 = vld [vmem:[#allocation2 + $0x98] sm:$0xff]
        %v266 = vld [vmem:[#allocation2 + $0xa0] sm:$0xff]
        %v267 = vld [vmem:[#allocation2 + $0xa8] sm:$0xff]
        %v268 = vld [vmem:[#allocation2 + $0xb0] sm:$0xff]
        %v269 = vld [vmem:[#allocation2 + $0xb8] sm:$0xff]
        %v270 = vld [vmem:[#allocation2 + $0xc0] sm:$0xff]
        %v271 = vld [vmem:[#allocation2 + $0xc8] sm:$0xff]
        %v272 = vld [vmem:[#allocation2 + $0xd0] sm:$0xff]
        %v273 = vld [vmem:[#allocation2 + $0xd8] sm:$0xff]
        %v274 = vld [vmem:[#allocation2 + $0xe0] sm:$0xff]
        %v275 = vld [vmem:[#allocation2 + $0xe8] sm:$0xff]
        %v276 = vld [vmem:[#allocation2 + $0xf0] sm:$0xff]
        %v277 = vld [vmem:[#allocation2 + $0xf8] sm:$0xff]
        %v310 = vunpack.c.l.b16 %v246
        %v311 = vunpack.c.h.b16 %v246
        %v312 = vunpack.c.l.b16 %v247
        %v313 = vunpack.c.h.b16 %v247
        %v314 = vunpack.c.l.b16 %v248
        %v315 = vunpack.c.h.b16 %v248
        %v316 = vunpack.c.l.b16 %v249
        %v317 = vunpack.c.h.b16 %v249
        %v318 = vunpack.c.l.b16 %v250
        %v319 = vunpack.c.h.b16 %v250
        %v320 = vunpack.c.l.b16 %v251
        %v321 = vunpack.c.h.b16 %v251
        %v322 = vunpack.c.l.b16 %v252
        %v323 = vunpack.c.h.b16 %v252
        %v324 = vunpack.c.l.b16 %v253
        %v325 = vunpack.c.h.b16 %v253
        %v326 = vunpack.c.l.b16 %v254
        %v327 = vunpack.c.h.b16 %v254
        %v328 = vunpack.c.l.b16 %v255
        %v329 = vunpack.c.h.b16 %v255
        %v330 = vunpack.c.l.b16 %v256
        %v331 = vunpack.c.h.b16 %v256
        %v332 = vunpack.c.l.b16 %v257
        %v333 = vunpack.c.h.b16 %v257
        %v334 = vunpack.c.l.b16 %v258
        %v335 = vunpack.c.h.b16 %v258
        %v336 = vunpack.c.l.b16 %v259
        %v337 = vunpack.c.h.b16 %v259
        %v338 = vunpack.c.l.b16 %v260
        %v339 = vunpack.c.h.b16 %v260
        %v340 = vunpack.c.l.b16 %v261
        %v341 = vunpack.c.h.b16 %v261
        %v342 = vunpack.c.l.b16 %v262
        %v343 = vunpack.c.h.b16 %v262
        %v344 = vunpack.c.l.b16 %v263
        %v345 = vunpack.c.h.b16 %v263
        %v346 = vunpack.c.l.b16 %v264
        %v347 = vunpack.c.h.b16 %v264
        %v348 = vunpack.c.l.b16 %v265
        %v349 = vunpack.c.h.b16 %v265
        %v350 = vunpack.c.l.b16 %v266
        %v351 = vunpack.c.h.b16 %v266
        %v352 = vunpack.c.l.b16 %v267
        %v353 = vunpack.c.h.b16 %v267
        %v354 = vunpack.c.l.b16 %v268
        %v355 = vunpack.c.h.b16 %v268
        %v356 = vunpack.c.l.b16 %v269
        %v357 = vunpack.c.h.b16 %v269
        %v358 = vunpack.c.l.b16 %v270
        %v359 = vunpack.c.h.b16 %v270
        %v360 = vunpack.c.l.b16 %v271
        %v361 = vunpack.c.h.b16 %v271
        %v362 = vunpack.c.l.b16 %v272
        %v363 = vunpack.c.h.b16 %v272
        %v364 = vunpack.c.l.b16 %v273
        %v365 = vunpack.c.h.b16 %v273
        %v366 = vunpack.c.l.b16 %v274
        %v367 = vunpack.c.h.b16 %v274
        %v368 = vunpack.c.l.b16 %v275
        %v369 = vunpack.c.h.b16 %v275
        %v370 = vunpack.c.l.b16 %v276
        %v371 = vunpack.c.h.b16 %v276
        %v372 = vunpack.c.l.b16 %v277
        %v373 = vunpack.c.h.b16 %v277
        %v374 = vpack.c.b16 %v312, %v310
        %v375 = vpack.c.b16 %v313, %v311
        %v376 = vpack.c.b16 %v316, %v314
        %v377 = vpack.c.b16 %v317, %v315
        %v378 = vpack.c.b16 %v320, %v318
        %v379 = vpack.c.b16 %v321, %v319
        %v380 = vpack.c.b16 %v324, %v322
        %v381 = vpack.c.b16 %v325, %v323
        %v382 = vpack.c.b16 %v328, %v326
        %v383 = vpack.c.b16 %v329, %v327
        %v384 = vpack.c.b16 %v332, %v330
        %v385 = vpack.c.b16 %v333, %v331
        %v386 = vpack.c.b16 %v336, %v334
        %v387 = vpack.c.b16 %v337, %v335
        %v388 = vpack.c.b16 %v340, %v338
        %v389 = vpack.c.b16 %v341, %v339
        %v390 = vpack.c.b16 %v344, %v342
        %v391 = vpack.c.b16 %v345, %v343
        %v392 = vpack.c.b16 %v348, %v346
        %v393 = vpack.c.b16 %v349, %v347
        %v394 = vpack.c.b16 %v352, %v350
        %v395 = vpack.c.b16 %v353, %v351
        %v396 = vpack.c.b16 %v356, %v354
        %v397 = vpack.c.b16 %v357, %v355
        %v398 = vpack.c.b16 %v360, %v358
        %v399 = vpack.c.b16 %v361, %v359
        %v400 = vpack.c.b16 %v364, %v362
        %v401 = vpack.c.b16 %v365, %v363
        %v402 = vpack.c.b16 %v368, %v366
        %v403 = vpack.c.b16 %v369, %v367
        %v404 = vpack.c.b16 %v372, %v370
        %v405 = vpack.c.b16 %v373, %v371
        %438 = vmatprep.subr.bf16.mxu0 %v375
        %439 = vmatpush1.bf16.msra.mxu0 %v374
        %440 = vmatprep.subr.bf16.mxu0 %v377
        %441 = vmatpush1.bf16.msra.mxu0 %v376
        %442 = vmatprep.subr.bf16.mxu0 %v379
        %443 = vmatpush1.bf16.msra.mxu0 %v378
        %444 = vmatprep.subr.bf16.mxu0 %v381
        %445 = vmatpush1.bf16.msra.mxu0 %v380
        %446 = vmatprep.subr.bf16.mxu0 %v383
        %447 = vmatpush1.bf16.msra.mxu0 %v382
        %448 = vmatprep.subr.bf16.mxu0 %v385
        %449 = vmatpush1.bf16.msra.mxu0 %v384
        %450 = vmatprep.subr.bf16.mxu0 %v387
        %451 = vmatpush1.bf16.msra.mxu0 %v386
        %452 = vmatprep.subr.bf16.mxu0 %v389
        %453 = vmatpush1.bf16.msra.mxu0 %v388
        %454 = vmatprep.subr.bf16.mxu0 %v391
        %455 = vmatpush1.bf16.msra.mxu0 %v390
        %456 = vmatprep.subr.bf16.mxu0 %v393
        %457 = vmatpush1.bf16.msra.mxu0 %v392
        %458 = vmatprep.subr.bf16.mxu0 %v395
        %459 = vmatpush1.bf16.msra.mxu0 %v394
        %460 = vmatprep.subr.bf16.mxu0 %v397
        %461 = vmatpush1.bf16.msra.mxu0 %v396
        %462 = vmatprep.subr.bf16.mxu0 %v399
        %463 = vmatpush1.bf16.msra.mxu0 %v398
        %464 = vmatprep.subr.bf16.mxu0 %v401
        %465 = vmatpush1.bf16.msra.mxu0 %v400
        %466 = vmatprep.subr.bf16.mxu0 %v403
        %467 = vmatpush1.bf16.msra.mxu0 %v402
        %468 = vmatprep.subr.bf16.mxu0 %v405
        %469 = vmatpush1.bf16.msra.mxu0 %v404
        %470 = vmatprep.mubr.bf16.mxu0 %v245
        %471 = vmatmul.mubr.bf16.gmra.mrb[0].mxu0 %v244
        %v472 = vpop.f32.mrb[0].mxu0
        %v473 = vadd.f32 0.0, %v472
        %v474 = vpop.f32.mrb[0].mxu0
        %v475 = vadd.f32 0.0, %v474
        %v476 = vpop.f32.mrb[0].mxu0
        %v477 = vpop.f32.mrb[0].mxu0
        %478 = vdwg.mxu0
        %479 = vmatprep.subr.bf16.mxu0 %v375
        %480 = vmatpush1.bf16.msra.mxu0 %v374
        %481 = vmatprep.subr.bf16.mxu0 %v377
        %482 = vmatpush1.bf16.msra.mxu0 %v376
        %483 = vmatprep.subr.bf16.mxu0 %v379
        %484 = vmatpush1.bf16.msra.mxu0 %v378
        %485 = vmatprep.subr.bf16.mxu0 %v381
        %486 = vmatpush1.bf16.msra.mxu0 %v380
        %487 = vmatprep.subr.bf16.mxu0 %v383
        %488 = vmatpush1.bf16.msra.mxu0 %v382
        %489 = vmatprep.subr.bf16.mxu0 %v385
        %490 = vmatpush1.bf16.msra.mxu0 %v384
        %491 = vmatprep.subr.bf16.mxu0 %v387
        %492 = vmatpush1.bf16.msra.mxu0 %v386
        %493 = vmatprep.subr.bf16.mxu0 %v389
        %494 = vmatpush1.bf16.msra.mxu0 %v388
        %495 = vmatprep.subr.bf16.mxu0 %v391
        %496 = vmatpush1.bf16.msra.mxu0 %v390
        %497 = vmatprep.subr.bf16.mxu0 %v393
        %498 = vmatpush1.bf16.msra.mxu0 %v392
        %499 = vmatprep.subr.bf16.mxu0 %v395
        %500 = vmatpush1.bf16.msra.mxu0 %v394
        %501 = vmatprep.subr.bf16.mxu0 %v397
        %502 = vmatpush1.bf16.msra.mxu0 %v396
        %503 = vmatprep.subr.bf16.mxu0 %v399
        %504 = vmatpush1.bf16.msra.mxu0 %v398
        %505 = vmatprep.subr.bf16.mxu0 %v401
        %506 = vmatpush1.bf16.msra.mxu0 %v400
        %507 = vmatprep.subr.bf16.mxu0 %v403
        %508 = vmatpush1.bf16.msra.mxu0 %v402
        %509 = vmatprep.subr.bf16.mxu0 %v405
        %510 = vmatpush1.bf16.msra.mxu0 %v404
        %511 = vmatprep.mubr.bf16.mxu0 %v239
        %512 = vmatmul.mubr.bf16.gmra.mrb[0].mxu0 %v238
        %v513 = vpop.f32.mrb[0].mxu0
        %v514 = vadd.f32 %v473, %v513
        %v515 = vpop.f32.mrb[0].mxu0
        %v516 = vadd.f32 %v475, %v515
        %v517 = vpop.f32.mrb[0].mxu0
        %v518 = vpop.f32.mrb[0].mxu0
        %519 = vdwg.mxu0
        %v520 = vmul.f32 %v514, 0.04
        %v521 = vmul.f32 %v516, 0.04
        %v522 = vadd.f32 %v177, %v178
        %523 = vadd.xlane.f32.xlu0 %v522
        %v524 = vpop.xlane.xlu0 %523
        %v525 = vmul.f32 %v524, 0.00390625
        %v526 = vsub.f32 %v177, %v525
        %v527 = vsub.f32 %v178, %v525
        %v528 = vmul.f32 %v526, %v526
        %v529 = vmul.f32 %v527, %v527
        %v530 = vadd.f32 %v528, %v529
        %531 = vadd.xlane.f32.xlu0 %v530
        %v532 = vpop.xlane.xlu0 %531
        %v533 = vmul.f32 %v532, 0.003921569
        %v534 = vrsqrt.pop %v533
        %v535 = vmul.f32 %v533, %v534
        %vm536 = vcmp.eq.f32.partialorder %v533, inf
        %v537 = vsel %vm536, %v533, %v535
        %vm538 = vcmp.eq.f32.partialorder %v533, 0.0
        %v539 = vand.u32 %v533, 2147483648
        %v540 = vsel %vm538, %v539, %v537
        %v541 = vmul.f32 %v540, 0.5
        %v542 = vadd.f32 %v520, %v541
        %v543 = vadd.f32 %v521, %v541
        %vm544 = vcmp.gt.f32.partialorder %v177, %v542
        %vm545 = vcmp.gt.f32.partialorder %v178, %v543
        %v546 = vsel %vm544, %v175, 0.0
        %v547 = vsel %vm545, %v176, 0.0
        %548 = vrot.lane.b32.xlu0 %v546, 127
        %v549 = vpop.permute.xlu0 %548
        %550 = vrot.lane.b32.xlu0 %v547, 127
        %v551 = vpop.permute.xlu0 %550
        %vm552 = vcmp.lt.s32.totalorder %v180, 127
        %v553 = vsel %vm552, %v549, %v551
        %v554 = vsel %vm552, %v551, %v549
        %v555 = vsel %vm212, 1, 0
        %v556 = vsel %vm213, 1, 0
        %vm557 = vcmp.eq.s32.totalorder %v555, 1
        %vm558 = vcmp.eq.s32.totalorder %v556, 1
        %v559 = vsel %vm557, %v553, %v546
        %v560 = vsel %vm558, %v554, %v547
        %v561 = vmax.f32 %v546, %v559
        %v562 = vmax.f32 %v547, %v560
        %563 = vrot.lane.b32.xlu0 %v546, 1
        %v564 = vpop.permute.xlu0 %563
        %565 = vrot.lane.b32.xlu0 %v547, 1
        %v566 = vpop.permute.xlu0 %565
        %vm567 = vcmp.lt.s32.totalorder %v180, 1
        %v568 = vsel %vm567, %v564, %v566
        %v569 = vsel %vm567, %v566, %v564
        %v570 = vsel %vm220, 1, 0
        %v571 = vsel %vm221, 1, 0
        %vm572 = vcmp.eq.s32.totalorder %v570, 1
        %vm573 = vcmp.eq.s32.totalorder %v571, 1
        %v574 = vsel %vm572, %v569, %v546
        %v575 = vsel %vm573, %v568, %v547
        %v576 = vmax.f32 %v561, %v574
        %v577 = vmax.f32 %v562, %v575
        %578 = vrot.lane.b32.xlu0 %v576, 112
        %v579 = vpop.permute.xlu0 %578
        %580 = vrot.lane.b32.xlu0 %v577, 112
        %v581 = vpop.permute.xlu0 %580
        %vm582 = vcmp.lt.s32.totalorder %v180, 112
        %v583 = vsel %vm582, %v579, %v581
        %v584 = vsel %vm582, %v581, %v579
        %v585 = vsel %vm228, 1, 0
        %v586 = vsel %vm229, 1, 0
        %vm587 = vcmp.eq.s32.totalorder %v585, 1
        %vm588 = vcmp.eq.s32.totalorder %v586, 1
        %v589 = vsel %vm587, %v583, %v576
        %v590 = vsel %vm588, %v584, %v577
        %v591 = vmax.f32 %v576, %v589
        %v592 = vmax.f32 %v577, %v590
        %593 = vrot.lane.b32.xlu0 %v576, 16
        %v594 = vpop.permute.xlu0 %593
        %595 = vrot.lane.b32.xlu0 %v577, 16
        %v596 = vpop.permute.xlu0 %595
        %vm597 = vcmp.lt.s32.totalorder %v180, 16
        %v598 = vsel %vm597, %v594, %v596
        %v599 = vsel %vm597, %v596, %v594
        %v600 = vsel %vm236, 1, 0
        %v601 = vsel %vm237, 1, 0
        %vm602 = vcmp.eq.s32.totalorder %v600, 1
        %vm603 = vcmp.eq.s32.totalorder %v601, 1
        %v604 = vsel %vm602, %v599, %v576
        %v605 = vsel %vm603, %v598, %v577
        %v606 = vmax.f32 %v591, %v604
        %v607 = vmax.f32 %v592, %v605
        %608 = vrot.lane.b32.xlu0 %v606, 127
        %v609 = vpop.permute.xlu0 %608
        %610 = vrot.lane.b32.xlu0 %v607, 127
        %v611 = vpop.permute.xlu0 %610
        %v612 = vsel %vm552, %v609, %v611
        %v613 = vsel %vm552, %v611, %v609
        %v614 = vsel %vm557, %v612, %v606
        %v615 = vsel %vm558, %v613, %v607
        %v616 = vmin.f32 %v606, %v614
        %v617 = vmin.f32 %v607, %v615
        %618 = vrot.lane.b32.xlu0 %v606, 1
        %v619 = vpop.permute.xlu0 %618
        %620 = vrot.lane.b32.xlu0 %v607, 1
        %v621 = vpop.permute.xlu0 %620
        %v622 = vsel %vm567, %v619, %v621
        %v623 = vsel %vm567, %v621, %v619
        %v624 = vsel %vm572, %v623, %v606
        %v625 = vsel %vm573, %v622, %v607
        %v626 = vmin.f32 %v616, %v624
        %v627 = vmin.f32 %v617, %v625
        %628 = vrot.lane.b32.xlu0 %v626, 112
        %v629 = vpop.permute.xlu0 %628
        %630 = vrot.lane.b32.xlu0 %v627, 112
        %v631 = vpop.permute.xlu0 %630
        %v632 = vsel %vm582, %v629, %v631
        %v633 = vsel %vm582, %v631, %v629
        %v634 = vsel %vm587, %v632, %v626
        %v635 = vsel %vm588, %v633, %v627
        %v636 = vmin.f32 %v626, %v634
        %v637 = vmin.f32 %v627, %v635
        %638 = vrot.lane.b32.xlu0 %v626, 16
        %v639 = vpop.permute.xlu0 %638
        %640 = vrot.lane.b32.xlu0 %v627, 16
        %v641 = vpop.permute.xlu0 %640
        %v642 = vsel %vm597, %v639, %v641
        %v643 = vsel %vm597, %v641, %v639
        %v644 = vsel %vm602, %v643, %v626
        %v645 = vsel %vm603, %v642, %v627
        %v646 = vmin.f32 %v636, %v644
        %v647 = vmin.f32 %v637, %v645
        %648 = vst [vmem:[%s174] sm:$0xff] %v646
        %649 = vst [vmem:[%s174 + $0x8] sm:$0xff] %v647
        %s650 = sand.u32 %s75, 1
        %s651 = scalar_lea.sflag [#allocation4], %s650
        %s652 = sand.u32 %s75, 1
        %s653 = smul.addr %s652, 16
        %s654 = scalar_lea.vmem [#allocation7], %s653
        // Predicated region
        $region37: #{tpu_custom_call.1} parent=27 // pred_check
          %p655 = pneg %p85
        $region38: #{tpu_custom_call.1} parent=27 // pred_check_branch
          %657 = sbr.rel (%p655) target = $region40
        $region39: #{tpu_custom_call.1} parent=27 // pred_region
          %s659 = ssub.s32 256, 256
          %660 = vsyncadd %s651, %s659
          %s661 = smul.addr %s20, 2
          %s662 = smul.addr %s661, 128
          %s663 = scalar_lea.hbm %s2, %s662
          %s665 = sshll.u32 %s654, 4
          %s666 = int_to_ptr.vmem [resolvable:$true] %s665
          %668 = dma.vmem_to_hbm [thread:$0]  %s666, 256, %s663, %s651
        $region40: #{tpu_custom_call.1} parent=27 // pred_fallthru
          _
      $region28: #{tpu_custom_call.1} parent=5 // pred_fallthru
        _
      %p669 = scmp.le.s32.totalorder 2, %s15
      // Predicated region
      $region41: #{tpu_custom_call.1} parent=5 // pred_check
        %p670 = pneg %p669
      $region42: #{tpu_custom_call.1} parent=5 // pred_check_branch
        %672 = sbr.rel (%p670) target = $region44
      $region43: #{tpu_custom_call.1} parent=5 // pred_region
        %s673 = ssub.s32 %s15, 2
        // Predicated region
        $region45: #{tpu_custom_call.1} parent=43 // pred_check
          %p674 = pneg %p91
        $region46: #{tpu_custom_call.1} parent=43 // pred_check_branch
          %676 = sbr.rel (%p674) target = $region48
        $region47: #{tpu_custom_call.1} parent=43 // pred_region
          %s677 = sand.u32 %s76, 1
          %s678 = scalar_lea.sflag [#allocation4], %s677
          %s679 = sand.u32 %s76, 1
          %s680 = smul.addr %s679, 16
          %s681 = scalar_lea.vmem [#allocation7], %s680
          %682 = dma.done %s678, 256
        $region48: #{tpu_custom_call.1} parent=43 // pred_fallthru
          _
      $region44: #{tpu_custom_call.1} parent=5 // pred_fallthru
        _
    $region6: #{tpu_custom_call.1} parent=1 // loop_footer
      %s19 = sadd.s32 1, %s15
    $region7: #{tpu_custom_call.1} parent=1 // loop_footer_branch
      %14 = sbr.rel target = $region3
    $region8: #{tpu_custom_call.1} parent=1 // loop_exit
      _
    %683 = vsyncpa [#allocation3], 1
    %s684 = scalar_lea.sflag [#allocation3], 1
    %685 = vsyncpa %s684, 1
    %686 = vsyncpa [#allocation6], 1
    %s687 = scalar_lea.sflag [#allocation6], 1
    %688 = vsyncpa %s687, 1
    %689 = vsyncpa [#allocation4], 1
    %s690 = scalar_lea.sflag [#allocation4], 1
    %691 = vsyncpa %s690, 1

// kernel: tpu_custom_call.1
$region0: #{tpu_custom_call.1}
  #allocation0 [shape = 'u32[]', space=smem, size = 0x4, offset = 0x4, fixed_abs, tag = 'smem constant byte address 0x4 - core index']
  #allocation1 [shape = 'u32[144,128]{1,0:T(1,128)}', space=vmem, size = 0x12000, scoped, tag = 'internal scratch']
  %s0 = inlined_call_operand.hbm [shape: bf16[256,256], index: 0, kind: input, shape index: {}]
  %s1 = inlined_call_operand.hbm [shape: f32[64,256], index: 1, kind: input, shape index: {}]
  %s2 = inlined_call_operand.hbm [shape: f32[64,256], index: 2, kind: output, shape index: {}]
  %s3 = sld [smem:[#allocation0]]
  $region49: #{tpu_custom_call.1} parent=0
    _
  %s5 = ssub.s32 1, %s3
  %s6 = scalar_select 0, %s5, %s3
  $region1: #{tpu_custom_call.1} parent=0
    #allocation2 [shape = 'u8[131072]{0}', space=vmem, size = 0x20000, scoped, tag = 'input window, operand 0, single buffered']
    #allocation3 [shape = 's32[2]{0}', space=sflag, size = 0x8, scoped, tag = 'scoped memory for tpu_custom_call.1']
    #allocation4 [shape = 's32[2]{0}', space=sflag, size = 0x8, scoped, tag = 'scoped memory for tpu_custom_call.1']
    #allocation5 [shape = 'u8[16384]{0}', space=vmem, size = 0x4000, scoped, tag = 'input window, operand 1']
    #allocation6 [shape = 's32[2]{0}', space=sflag, size = 0x8, scoped, tag = 'scoped memory for tpu_custom_call.1']
    #allocation7 [shape = 'u8[16384]{0}', space=vmem, size = 0x4000, scoped, tag = 'output window, operand 0']
    %7 = vsyncpa [#allocation3], 0
    %8 = vsyncpa [#allocation6], 0
    %s9 = scalar_lea.sflag [#allocation6], 1
    %10 = vsyncpa %s9, 0
    %11 = vsyncpa [#allocation4], 0
    %s12 = scalar_lea.sflag [#allocation4], 1
    %13 = vsyncpa %s12, 0
    loop: start=0, step=1, limit=10
    $region2: #{tpu_custom_call.1} parent=1 // loop_pre_header
      _
    $region3: #{tpu_custom_call.1} parent=1 // loop_header
      %s15 = sphi 0, %s19
      %p16 = scmp.ge.s32.totalorder %s15, 10
      %s23 = sphi 0, %s23
      %s25 = sphi 0, %s23
      %s26 = sphi 0, %s25
      %s40 = sphi 0, %s26
      %s46 = sphi 0, %s48
      %s49 = sphi 0, %s46
      %s50 = sphi 0, %s49
      %s66 = sphi 0, %s50
      %s72 = sphi 0, %s74
      %s75 = sphi 0, %s72
      %s76 = sphi 0, %s75
      %s92 = sphi 0, %s76
    $region4: #{tpu_custom_call.1} parent=1 // loop_header_branch
      %18 = sbr.rel (%p16) target = $region8
    $region5: #{tpu_custom_call.1} parent=1 // loop_body
      %s20 = ssub.s32 %s15, 1
      %s21 = ssub.s32 %s15, 2
      %s22 = sadd.s32 %s15, 1
      %s24 = sadd.s32 %s23, 1
      %p27 = scmp.eq.s32.totalorder %s15, 7
      %p28 = scmp.ne.s32.totalorder %s23, %s25
      %p29 = scmp.eq.s32.totalorder %s15, 0
      %p30 = por %p28, %p29
      %p31 = scmp.ne.s32.totalorder %s23, %s25
      %p32 = scmp.eq.s32.totalorder %s20, 7
      %p33 = por %p31, %p32
      %p34 = scmp.ne.s32.totalorder %s25, %s26
      %p35 = scmp.eq.s32.totalorder %s20, 0
      %p36 = por %p34, %p35
      %p37 = scmp.ne.s32.totalorder %s25, %s26
      %p38 = scmp.eq.s32.totalorder %s21, 7
      %p39 = por %p37, %p38
      %p41 = scmp.ne.s32.totalorder %s26, %s40
      %p42 = scmp.eq.s32.totalorder %s21, 0
      %p43 = por %p41, %p42
      %s44 = ssub.s32 %s15, %s22
      %p45 = scmp.eq.s32.totalorder %s44, 0
      %s47 = sadd.s32 %s46, 1
      %s48 = scalar_select %p45, %s46, %s47
      %p51 = pneg %p45
      %p52 = scmp.eq.s32.totalorder %s15, 7
      %p53 = por %p51, %p52
      %p54 = scmp.ne.s32.totalorder %s46, %s49
      %p55 = scmp.eq.s32.totalorder %s15, 0
      %p56 = por %p54, %p55
      %p57 = scmp.ne.s32.totalorder %s46, %s49
      %p58 = scmp.eq.s32.totalorder %s20, 7
      %p59 = por %p57, %p58
      %p60 = scmp.ne.s32.totalorder %s49, %s50
      %p61 = scmp.eq.s32.totalorder %s20, 0
      %p62 = por %p60, %p61
      %p63 = scmp.ne.s32.totalorder %s49, %s50
      %p64 = scmp.eq.s32.totalorder %s21, 7
      %p65 = por %p63, %p64
      %p67 = scmp.ne.s32.totalorder %s50, %s66
      %p68 = scmp.eq.s32.totalorder %s21, 0
      %p69 = por %p67, %p68
      %s70 = ssub.s32 %s15, %s22
      %p71 = scmp.eq.s32.totalorder %s70, 0
      %s73 = sadd.s32 %s72, 1
      %s74 = scalar_select %p71, %s72, %s73
      %p77 = pneg %p71
      %p78 = scmp.eq.s32.totalorder %s15, 7
      %p79 = por %p77, %p78
      %p80 = scmp.ne.s32.totalorder %s72, %s75
      %p81 = scmp.eq.s32.totalorder %s15, 0
      %p82 = por %p80, %p81
      %p83 = scmp.ne.s32.totalorder %s72, %s75
      %p84 = scmp.eq.s32.totalorder %s20, 7
      %p85 = por %p83, %p84
      %p86 = scmp.ne.s32.totalorder %s75, %s76
      %p87 = scmp.eq.s32.totalorder %s20, 0
      %p88 = por %p86, %p87
      %p89 = scmp.ne.s32.totalorder %s75, %s76
      %p90 = scmp.eq.s32.totalorder %s21, 7
      %p91 = por %p89, %p90
      %p93 = scmp.ne.s32.totalorder %s76, %s92
      %p94 = scmp.eq.s32.totalorder %s21, 0
      %p95 = por %p93, %p94
      %p96 = scmp.le.s32.totalorder 1, %s15
      %p97 = scmp.lt.s32.totalorder %s15, 9
      %p98 = pnand %p96, %p97
      %p99 = pneg %p98
      // Predicated region
      $region9: #{tpu_custom_call.1} parent=5 // pred_check
        _
      $region10: #{tpu_custom_call.1} parent=5 // pred_check_branch
        %101 = sbr.rel (%p98) target = $region12
      $region11: #{tpu_custom_call.1} parent=5 // pred_region
        %s102 = ssub.s32 %s15, 1
        // Predicated region
        $region13: #{tpu_custom_call.1} parent=11 // pred_check
          %p103 = pneg %p36
        $region14: #{tpu_custom_call.1} parent=11 // pred_check_branch
          %105 = sbr.rel (%p103) target = $region16
        $region15: #{tpu_custom_call.1} parent=11 // pred_region
          %s107 = ssub.s32 4096, 4096
          %108 = vsyncadd [#allocation3], %s107
          %s109 = sshll.u32 [#allocation2], 4
          %s110 = int_to_ptr.vmem [resolvable:$true] %s109
          %115 = dma.hbm_to_vmem [thread:$0]  %s0, 4096, %s110, [#allocation3], 128, 128, 8
        $region16: #{tpu_custom_call.1} parent=11 // pred_fallthru
          _
      $region12: #{tpu_custom_call.1} parent=5 // pred_fallthru
        _
      %p116 = scmp.lt.s32.totalorder %s15, 8
      // Predicated region
      $region17: #{tpu_custom_call.1} parent=5 // pred_check
        %p117 = pneg %p116
      $region18: #{tpu_custom_call.1} parent=5 // pred_check_branch
        %119 = sbr.rel (%p117) target = $region20
      $region19: #{tpu_custom_call.1} parent=5 // pred_region
        // Predicated region
        $region21: #{tpu_custom_call.1} parent=19 // pred_check
          %p120 = pneg %p56
        $region22: #{tpu_custom_call.1} parent=19 // pred_check_branch
          %122 = sbr.rel (%p120) target = $region24
        $region23: #{tpu_custom_call.1} parent=19 // pred_region
          %s123 = sand.u32 %s46, 1
          %s124 = scalar_lea.sflag [#allocation6], %s123
          %s125 = sand.u32 %s46, 1
          %s126 = smul.addr %s125, 16
          %s127 = scalar_lea.vmem [#allocation5], %s126
          %s129 = ssub.s32 256, 256
          %130 = vsyncadd %s124, %s129
          %s131 = smul.addr %s15, 2
          %s132 = smul.addr %s131, 128
          %s133 = scalar_lea.hbm %s1, %s132
          %s135 = sshll.u32 %s127, 4
          %s136 = int_to_ptr.vmem [resolvable:$true] %s135
          %138 = dma.hbm_to_vmem [thread:$0]  %s133, 256, %s136, %s124
        $region24: #{tpu_custom_call.1} parent=19 // pred_fallthru
          _
      $region20: #{tpu_custom_call.1} parent=5 // pred_fallthru
        _
      %p139 = scmp.le.s32.totalorder 1, %s15
      %p140 = scmp.lt.s32.totalorder %s15, 9
      %p141 = pnand %p139, %p140
      %p142 = pneg %p141
      // Predicated region
      $region25: #{tpu_custom_call.1} parent=5 // pred_check
        _
      $region26: #{tpu_custom_call.1} parent=5 // pred_check_branch
        %144 = sbr.rel (%p141) target = $region28
      $region27: #{tpu_custom_call.1} parent=5 // pred_region
        %s145 = ssub.s32 %s15, 1
        // Predicated region
        $region29: #{tpu_custom_call.1} parent=27 // pred_check
          %p146 = pneg %p36
        $region30: #{tpu_custom_call.1} parent=27 // pred_check_branch
          %148 = sbr.rel (%p146) target = $region32
        $region31: #{tpu_custom_call.1} parent=27 // pred_region
          %149 = dma.done [#allocation3], 4096
        $region32: #{tpu_custom_call.1} parent=27 // pred_fallthru
          _
        %s150 = sand.u32 %s49, 1
        %s151 = scalar_lea.sflag [#allocation6], %s150
        %s152 = sand.u32 %s49, 1
        %s153 = smul.addr %s152, 16
        %s154 = scalar_lea.vmem [#allocation5], %s153
        // Predicated region
        $region33: #{tpu_custom_call.1} parent=27 // pred_check
          %p155 = pneg %p62
        $region34: #{tpu_custom_call.1} parent=27 // pred_check_branch
          %157 = sbr.rel (%p155) target = $region36
        $region35: #{tpu_custom_call.1} parent=27 // pred_region
          %158 = dma.done %s151, 256
        $region36: #{tpu_custom_call.1} parent=27 // pred_fallthru
          _
        %p159 = pneg %p36
        %p160 = pneg %p33
        %s161 = sand.u32 %s49, 1
        %s162 = scalar_lea.sflag [#allocation6], %s161
        %s163 = sand.u32 %s49, 1
        %s164 = smul.addr %s163, 16
        %s165 = scalar_lea.vmem [#allocation5], %s164
        %p166 = pneg %p62
        %p167 = pneg %p59
        %p168 = pneg %p88
        %p169 = pneg %p85
        %s170 = sand.u32 %s75, 1
        %s171 = scalar_lea.sflag [#allocation4], %s170
        %s172 = sand.u32 %s75, 1
        %s173 = smul.addr %s172, 16
        %s174 = scalar_lea.vmem [#allocation7], %s173
        %v175 = vld [vmem:[%s154] sm:$0xff]
        %v176 = vld [vmem:[%s154 + $0x8] sm:$0xff]
        %v177 = vand.u32 2147483647, %v175
        %v178 = vand.u32 2147483647, %v176
        %v179 = vlaneseq
        %v180 = vand.u32 %v179, 127
        %v181 = vadd.s32 %v180, 128
        %vm182 = vcmp.lt.s32.totalorder %v180, 0
        %v183 = vsub.s32 0, %v180
        %v184 = vsel %vm182, %v183, %v180
        %v185 = vshrl.u32 %v184, 4
        %v186 = vand.u32 %v184, 15
        %v187 = vsub.s32 0, %v186
        %v188 = vsel %vm182, %v187, %v186
        %vm189 = vcmp.lt.s32.totalorder %v181, 0
        %v190 = vsub.s32 0, %v181
        %v191 = vsel %vm189, %v190, %v181
        %v192 = vshrl.u32 %v191, 4
        %v193 = vand.u32 %v191, 15
        %v194 = vsub.s32 0, %v193
        %v195 = vsel %vm189, %v194, %v193
        %vm196 = vcmp.ne.s32.totalorder %v188, 0
        %vm197 = vcmp.ne.s32.totalorder %v195, 0
        %vm198 = vcmp.lt.s32.totalorder %v188, 0
        %vm199 = vcmp.lt.s32.totalorder %v195, 0
        %vm200 = vmand %vm198, %vm196
        %vm201 = vmand %vm199, %vm197
        %v202 = vadd.s32 %v188, 16
        %v203 = vadd.s32 %v195, 16
        %v204 = vsel %vm200, %v202, %v188
        %v205 = vsel %vm201, %v203, %v195
        %v206 = vadd.s32 %v204, 1
        %v207 = vadd.s32 %v205, 1
        %vm208 = vcmp.ge.s32.totalorder %v206, 0
        %vm209 = vcmp.ge.s32.totalorder %v207, 0
        %vm210 = vcmp.lt.s32.totalorder %v206, 16
        %vm211 = vcmp.lt.s32.totalorder %v207, 16
        %vm212 = vmand %vm208, %vm210
        %vm213 = vmand %vm209, %vm211
        %v214 = vadd.s32 %v204, 4294967295
        %v215 = vadd.s32 %v205, 4294967295
        %vm216 = vcmp.ge.s32.totalorder %v214, 0
        %vm217 = vcmp.ge.s32.totalorder %v215, 0
        %vm218 = vcmp.lt.s32.totalorder %v214, 16
        %vm219 = vcmp.lt.s32.totalorder %v215, 16
        %vm220 = vmand %vm216, %vm218
        %vm221 = vmand %vm217, %vm219
        %v222 = vadd.s32 %v180, 16
        %v223 = vadd.s32 %v181, 16
        %vm224 = vcmp.ge.s32.totalorder %v222, 0
        %vm225 = vcmp.ge.s32.totalorder %v223, 0
        %vm226 = vcmp.lt.s32.totalorder %v222, 256
        %vm227 = vcmp.lt.s32.totalorder %v223, 256
        %vm228 = vmand %vm224, %vm226
        %vm229 = vmand %vm225, %vm227
        %v230 = vadd.s32 %v180, 4294967280
        %v231 = vadd.s32 %v181, 4294967280
        %vm232 = vcmp.ge.s32.totalorder %v230, 0
        %vm233 = vcmp.ge.s32.totalorder %v231, 0
        %vm234 = vcmp.lt.s32.totalorder %v230, 256
        %vm235 = vcmp.lt.s32.totalorder %v231, 256
        %vm236 = vmand %vm232, %vm234
        %vm237 = vmand %vm233, %vm235
        %v238 = vpack.c.bf16 %v177, %v177
        %v239 = vpack.c.bf16 %v178, %v178
        %v240 = vunpack.c.l.bf16 %v238
        %v241 = vunpack.c.l.bf16 %v239
        %v242 = vsub.f32 %v177, %v240
        %v243 = vsub.f32 %v178, %v241
        %v244 = vpack.c.bf16 %v242, %v242
        %v245 = vpack.c.bf16 %v243, %v243
        %v246 = vld [vmem:[#allocation2] sm:$0xff]
        %v247 = vld [vmem:[#allocation2 + $0x8] sm:$0xff]
        %v248 = vld [vmem:[#allocation2 + $0x10] sm:$0xff]
        %v249 = vld [vmem:[#allocation2 + $0x18] sm:$0xff]
        %v250 = vld [vmem:[#allocation2 + $0x20] sm:$0xff]
        %v251 = vld [vmem:[#allocation2 + $0x28] sm:$0xff]
        %v252 = vld [vmem:[#allocation2 + $0x30] sm:$0xff]
        %v253 = vld [vmem:[#allocation2 + $0x38] sm:$0xff]
        %v254 = vld [vmem:[#allocation2 + $0x40] sm:$0xff]
        %v255 = vld [vmem:[#allocation2 + $0x48] sm:$0xff]
        %v256 = vld [vmem:[#allocation2 + $0x50] sm:$0xff]
        %v257 = vld [vmem:[#allocation2 + $0x58] sm:$0xff]
        %v258 = vld [vmem:[#allocation2 + $0x60] sm:$0xff]
        %v259 = vld [vmem:[#allocation2 + $0x68] sm:$0xff]
        %v260 = vld [vmem:[#allocation2 + $0x70] sm:$0xff]
        %v261 = vld [vmem:[#allocation2 + $0x78] sm:$0xff]
        %v262 = vld [vmem:[#allocation2 + $0x80] sm:$0xff]
        %v263 = vld [vmem:[#allocation2 + $0x88] sm:$0xff]
        %v264 = vld [vmem:[#allocation2 + $0x90] sm:$0xff]
        %v265 = vld [vmem:[#allocation2 + $0x98] sm:$0xff]
        %v266 = vld [vmem:[#allocation2 + $0xa0] sm:$0xff]
        %v267 = vld [vmem:[#allocation2 + $0xa8] sm:$0xff]
        %v268 = vld [vmem:[#allocation2 + $0xb0] sm:$0xff]
        %v269 = vld [vmem:[#allocation2 + $0xb8] sm:$0xff]
        %v270 = vld [vmem:[#allocation2 + $0xc0] sm:$0xff]
        %v271 = vld [vmem:[#allocation2 + $0xc8] sm:$0xff]
        %v272 = vld [vmem:[#allocation2 + $0xd0] sm:$0xff]
        %v273 = vld [vmem:[#allocation2 + $0xd8] sm:$0xff]
        %v274 = vld [vmem:[#allocation2 + $0xe0] sm:$0xff]
        %v275 = vld [vmem:[#allocation2 + $0xe8] sm:$0xff]
        %v276 = vld [vmem:[#allocation2 + $0xf0] sm:$0xff]
        %v277 = vld [vmem:[#allocation2 + $0xf8] sm:$0xff]
        %v310 = vunpack.c.l.b16 %v246
        %v311 = vunpack.c.h.b16 %v246
        %v312 = vunpack.c.l.b16 %v247
        %v313 = vunpack.c.h.b16 %v247
        %v314 = vunpack.c.l.b16 %v248
        %v315 = vunpack.c.h.b16 %v248
        %v316 = vunpack.c.l.b16 %v249
        %v317 = vunpack.c.h.b16 %v249
        %v318 = vunpack.c.l.b16 %v250
        %v319 = vunpack.c.h.b16 %v250
        %v320 = vunpack.c.l.b16 %v251
        %v321 = vunpack.c.h.b16 %v251
        %v322 = vunpack.c.l.b16 %v252
        %v323 = vunpack.c.h.b16 %v252
        %v324 = vunpack.c.l.b16 %v253
        %v325 = vunpack.c.h.b16 %v253
        %v326 = vunpack.c.l.b16 %v254
        %v327 = vunpack.c.h.b16 %v254
        %v328 = vunpack.c.l.b16 %v255
        %v329 = vunpack.c.h.b16 %v255
        %v330 = vunpack.c.l.b16 %v256
        %v331 = vunpack.c.h.b16 %v256
        %v332 = vunpack.c.l.b16 %v257
        %v333 = vunpack.c.h.b16 %v257
        %v334 = vunpack.c.l.b16 %v258
        %v335 = vunpack.c.h.b16 %v258
        %v336 = vunpack.c.l.b16 %v259
        %v337 = vunpack.c.h.b16 %v259
        %v338 = vunpack.c.l.b16 %v260
        %v339 = vunpack.c.h.b16 %v260
        %v340 = vunpack.c.l.b16 %v261
        %v341 = vunpack.c.h.b16 %v261
        %v342 = vunpack.c.l.b16 %v262
        %v343 = vunpack.c.h.b16 %v262
        %v344 = vunpack.c.l.b16 %v263
        %v345 = vunpack.c.h.b16 %v263
        %v346 = vunpack.c.l.b16 %v264
        %v347 = vunpack.c.h.b16 %v264
        %v348 = vunpack.c.l.b16 %v265
        %v349 = vunpack.c.h.b16 %v265
        %v350 = vunpack.c.l.b16 %v266
        %v351 = vunpack.c.h.b16 %v266
        %v352 = vunpack.c.l.b16 %v267
        %v353 = vunpack.c.h.b16 %v267
        %v354 = vunpack.c.l.b16 %v268
        %v355 = vunpack.c.h.b16 %v268
        %v356 = vunpack.c.l.b16 %v269
        %v357 = vunpack.c.h.b16 %v269
        %v358 = vunpack.c.l.b16 %v270
        %v359 = vunpack.c.h.b16 %v270
        %v360 = vunpack.c.l.b16 %v271
        %v361 = vunpack.c.h.b16 %v271
        %v362 = vunpack.c.l.b16 %v272
        %v363 = vunpack.c.h.b16 %v272
        %v364 = vunpack.c.l.b16 %v273
        %v365 = vunpack.c.h.b16 %v273
        %v366 = vunpack.c.l.b16 %v274
        %v367 = vunpack.c.h.b16 %v274
        %v368 = vunpack.c.l.b16 %v275
        %v369 = vunpack.c.h.b16 %v275
        %v370 = vunpack.c.l.b16 %v276
        %v371 = vunpack.c.h.b16 %v276
        %v372 = vunpack.c.l.b16 %v277
        %v373 = vunpack.c.h.b16 %v277
        %v374 = vpack.c.b16 %v312, %v310
        %v375 = vpack.c.b16 %v313, %v311
        %v376 = vpack.c.b16 %v316, %v314
        %v377 = vpack.c.b16 %v317, %v315
        %v378 = vpack.c.b16 %v320, %v318
        %v379 = vpack.c.b16 %v321, %v319
        %v380 = vpack.c.b16 %v324, %v322
        %v381 = vpack.c.b16 %v325, %v323
        %v382 = vpack.c.b16 %v328, %v326
        %v383 = vpack.c.b16 %v329, %v327
        %v384 = vpack.c.b16 %v332, %v330
        %v385 = vpack.c.b16 %v333, %v331
        %v386 = vpack.c.b16 %v336, %v334
        %v387 = vpack.c.b16 %v337, %v335
        %v388 = vpack.c.b16 %v340, %v338
        %v389 = vpack.c.b16 %v341, %v339
        %v390 = vpack.c.b16 %v344, %v342
        %v391 = vpack.c.b16 %v345, %v343
        %v392 = vpack.c.b16 %v348, %v346
        %v393 = vpack.c.b16 %v349, %v347
        %v394 = vpack.c.b16 %v352, %v350
        %v395 = vpack.c.b16 %v353, %v351
        %v396 = vpack.c.b16 %v356, %v354
        %v397 = vpack.c.b16 %v357, %v355
        %v398 = vpack.c.b16 %v360, %v358
        %v399 = vpack.c.b16 %v361, %v359
        %v400 = vpack.c.b16 %v364, %v362
        %v401 = vpack.c.b16 %v365, %v363
        %v402 = vpack.c.b16 %v368, %v366
        %v403 = vpack.c.b16 %v369, %v367
        %v404 = vpack.c.b16 %v372, %v370
        %v405 = vpack.c.b16 %v373, %v371
        %438 = vmatprep.subr.bf16.mxu0 %v375
        %439 = vmatpush1.bf16.msra.mxu0 %v374
        %440 = vmatprep.subr.bf16.mxu0 %v377
        %441 = vmatpush1.bf16.msra.mxu0 %v376
        %442 = vmatprep.subr.bf16.mxu0 %v379
        %443 = vmatpush1.bf16.msra.mxu0 %v378
        %444 = vmatprep.subr.bf16.mxu0 %v381
        %445 = vmatpush1.bf16.msra.mxu0 %v380
        %446 = vmatprep.subr.bf16.mxu0 %v383
        %447 = vmatpush1.bf16.msra.mxu0 %v382
        %448 = vmatprep.subr.bf16.mxu0 %v385
        %449 = vmatpush1.bf16.msra.mxu0 %v384
        %450 = vmatprep.subr.bf16.mxu0 %v387
        %451 = vmatpush1.bf16.msra.mxu0 %v386
        %452 = vmatprep.subr.bf16.mxu0 %v389
        %453 = vmatpush1.bf16.msra.mxu0 %v388
        %454 = vmatprep.subr.bf16.mxu0 %v391
        %455 = vmatpush1.bf16.msra.mxu0 %v390
        %456 = vmatprep.subr.bf16.mxu0 %v393
        %457 = vmatpush1.bf16.msra.mxu0 %v392
        %458 = vmatprep.subr.bf16.mxu0 %v395
        %459 = vmatpush1.bf16.msra.mxu0 %v394
        %460 = vmatprep.subr.bf16.mxu0 %v397
        %461 = vmatpush1.bf16.msra.mxu0 %v396
        %462 = vmatprep.subr.bf16.mxu0 %v399
        %463 = vmatpush1.bf16.msra.mxu0 %v398
        %464 = vmatprep.subr.bf16.mxu0 %v401
        %465 = vmatpush1.bf16.msra.mxu0 %v400
        %466 = vmatprep.subr.bf16.mxu0 %v403
        %467 = vmatpush1.bf16.msra.mxu0 %v402
        %468 = vmatprep.subr.bf16.mxu0 %v405
        %469 = vmatpush1.bf16.msra.mxu0 %v404
        %470 = vmatprep.mubr.bf16.mxu0 %v245
        %471 = vmatmul.mubr.bf16.gmra.mrb[0].mxu0 %v244
        %v472 = vpop.f32.mrb[0].mxu0
        %v473 = vadd.f32 0.0, %v472
        %v474 = vpop.f32.mrb[0].mxu0
        %v475 = vadd.f32 0.0, %v474
        %v476 = vpop.f32.mrb[0].mxu0
        %v477 = vpop.f32.mrb[0].mxu0
        %478 = vdwg.mxu0
        %479 = vmatprep.subr.bf16.mxu0 %v375
        %480 = vmatpush1.bf16.msra.mxu0 %v374
        %481 = vmatprep.subr.bf16.mxu0 %v377
        %482 = vmatpush1.bf16.msra.mxu0 %v376
        %483 = vmatprep.subr.bf16.mxu0 %v379
        %484 = vmatpush1.bf16.msra.mxu0 %v378
        %485 = vmatprep.subr.bf16.mxu0 %v381
        %486 = vmatpush1.bf16.msra.mxu0 %v380
        %487 = vmatprep.subr.bf16.mxu0 %v383
        %488 = vmatpush1.bf16.msra.mxu0 %v382
        %489 = vmatprep.subr.bf16.mxu0 %v385
        %490 = vmatpush1.bf16.msra.mxu0 %v384
        %491 = vmatprep.subr.bf16.mxu0 %v387
        %492 = vmatpush1.bf16.msra.mxu0 %v386
        %493 = vmatprep.subr.bf16.mxu0 %v389
        %494 = vmatpush1.bf16.msra.mxu0 %v388
        %495 = vmatprep.subr.bf16.mxu0 %v391
        %496 = vmatpush1.bf16.msra.mxu0 %v390
        %497 = vmatprep.subr.bf16.mxu0 %v393
        %498 = vmatpush1.bf16.msra.mxu0 %v392
        %499 = vmatprep.subr.bf16.mxu0 %v395
        %500 = vmatpush1.bf16.msra.mxu0 %v394
        %501 = vmatprep.subr.bf16.mxu0 %v397
        %502 = vmatpush1.bf16.msra.mxu0 %v396
        %503 = vmatprep.subr.bf16.mxu0 %v399
        %504 = vmatpush1.bf16.msra.mxu0 %v398
        %505 = vmatprep.subr.bf16.mxu0 %v401
        %506 = vmatpush1.bf16.msra.mxu0 %v400
        %507 = vmatprep.subr.bf16.mxu0 %v403
        %508 = vmatpush1.bf16.msra.mxu0 %v402
        %509 = vmatprep.subr.bf16.mxu0 %v405
        %510 = vmatpush1.bf16.msra.mxu0 %v404
        %511 = vmatprep.mubr.bf16.mxu0 %v239
        %512 = vmatmul.mubr.bf16.gmra.mrb[0].mxu0 %v238
        %v513 = vpop.f32.mrb[0].mxu0
        %v514 = vadd.f32 %v473, %v513
        %v515 = vpop.f32.mrb[0].mxu0
        %v516 = vadd.f32 %v475, %v515
        %v517 = vpop.f32.mrb[0].mxu0
        %v518 = vpop.f32.mrb[0].mxu0
        %519 = vdwg.mxu0
        %v520 = vmul.f32 %v514, 0.04
        %v521 = vmul.f32 %v516, 0.04
        %v522 = vadd.f32 %v177, %v178
        %523 = vadd.xlane.f32.xlu0 %v522
        %v524 = vpop.xlane.xlu0 %523
        %v525 = vmul.f32 %v524, 0.00390625
        %v526 = vsub.f32 %v177, %v525
        %v527 = vsub.f32 %v178, %v525
        %v528 = vmul.f32 %v526, %v526
        %v529 = vmul.f32 %v527, %v527
        %v530 = vadd.f32 %v528, %v529
        %531 = vadd.xlane.f32.xlu0 %v530
        %v532 = vpop.xlane.xlu0 %531
        %v533 = vmul.f32 %v532, 0.003921569
        %v534 = vrsqrt.pop %v533
        %v535 = vmul.f32 %v533, %v534
        %vm536 = vcmp.eq.f32.partialorder %v533, inf
        %v537 = vsel %vm536, %v533, %v535
        %vm538 = vcmp.eq.f32.partialorder %v533, 0.0
        %v539 = vand.u32 %v533, 2147483648
        %v540 = vsel %vm538, %v539, %v537
        %v541 = vmul.f32 %v540, 0.5
        %v542 = vadd.f32 %v520, %v541
        %v543 = vadd.f32 %v521, %v541
        %vm544 = vcmp.gt.f32.partialorder %v177, %v542
        %vm545 = vcmp.gt.f32.partialorder %v178, %v543
        %v546 = vsel %vm544, %v175, 0.0
        %v547 = vsel %vm545, %v176, 0.0
        %548 = vrot.lane.b32.xlu0 %v546, 127
        %v549 = vpop.permute.xlu0 %548
        %550 = vrot.lane.b32.xlu0 %v547, 127
        %v551 = vpop.permute.xlu0 %550
        %vm552 = vcmp.lt.s32.totalorder %v180, 127
        %v553 = vsel %vm552, %v549, %v551
        %v554 = vsel %vm552, %v551, %v549
        %v555 = vsel %vm212, 1, 0
        %v556 = vsel %vm213, 1, 0
        %vm557 = vcmp.eq.s32.totalorder %v555, 1
        %vm558 = vcmp.eq.s32.totalorder %v556, 1
        %v559 = vsel %vm557, %v553, %v546
        %v560 = vsel %vm558, %v554, %v547
        %v561 = vmax.f32 %v546, %v559
        %v562 = vmax.f32 %v547, %v560
        %563 = vrot.lane.b32.xlu0 %v546, 1
        %v564 = vpop.permute.xlu0 %563
        %565 = vrot.lane.b32.xlu0 %v547, 1
        %v566 = vpop.permute.xlu0 %565
        %vm567 = vcmp.lt.s32.totalorder %v180, 1
        %v568 = vsel %vm567, %v564, %v566
        %v569 = vsel %vm567, %v566, %v564
        %v570 = vsel %vm220, 1, 0
        %v571 = vsel %vm221, 1, 0
        %vm572 = vcmp.eq.s32.totalorder %v570, 1
        %vm573 = vcmp.eq.s32.totalorder %v571, 1
        %v574 = vsel %vm572, %v569, %v546
        %v575 = vsel %vm573, %v568, %v547
        %v576 = vmax.f32 %v561, %v574
        %v577 = vmax.f32 %v562, %v575
        %578 = vrot.lane.b32.xlu0 %v576, 112
        %v579 = vpop.permute.xlu0 %578
        %580 = vrot.lane.b32.xlu0 %v577, 112
        %v581 = vpop.permute.xlu0 %580
        %vm582 = vcmp.lt.s32.totalorder %v180, 112
        %v583 = vsel %vm582, %v579, %v581
        %v584 = vsel %vm582, %v581, %v579
        %v585 = vsel %vm228, 1, 0
        %v586 = vsel %vm229, 1, 0
        %vm587 = vcmp.eq.s32.totalorder %v585, 1
        %vm588 = vcmp.eq.s32.totalorder %v586, 1
        %v589 = vsel %vm587, %v583, %v576
        %v590 = vsel %vm588, %v584, %v577
        %v591 = vmax.f32 %v576, %v589
        %v592 = vmax.f32 %v577, %v590
        %593 = vrot.lane.b32.xlu0 %v576, 16
        %v594 = vpop.permute.xlu0 %593
        %595 = vrot.lane.b32.xlu0 %v577, 16
        %v596 = vpop.permute.xlu0 %595
        %vm597 = vcmp.lt.s32.totalorder %v180, 16
        %v598 = vsel %vm597, %v594, %v596
        %v599 = vsel %vm597, %v596, %v594
        %v600 = vsel %vm236, 1, 0
        %v601 = vsel %vm237, 1, 0
        %vm602 = vcmp.eq.s32.totalorder %v600, 1
        %vm603 = vcmp.eq.s32.totalorder %v601, 1
        %v604 = vsel %vm602, %v599, %v576
        %v605 = vsel %vm603, %v598, %v577
        %v606 = vmax.f32 %v591, %v604
        %v607 = vmax.f32 %v592, %v605
        %608 = vrot.lane.b32.xlu0 %v606, 127
        %v609 = vpop.permute.xlu0 %608
        %610 = vrot.lane.b32.xlu0 %v607, 127
        %v611 = vpop.permute.xlu0 %610
        %v612 = vsel %vm552, %v609, %v611
        %v613 = vsel %vm552, %v611, %v609
        %v614 = vsel %vm557, %v612, %v606
        %v615 = vsel %vm558, %v613, %v607
        %v616 = vmin.f32 %v606, %v614
        %v617 = vmin.f32 %v607, %v615
        %618 = vrot.lane.b32.xlu0 %v606, 1
        %v619 = vpop.permute.xlu0 %618
        %620 = vrot.lane.b32.xlu0 %v607, 1
        %v621 = vpop.permute.xlu0 %620
        %v622 = vsel %vm567, %v619, %v621
        %v623 = vsel %vm567, %v621, %v619
        %v624 = vsel %vm572, %v623, %v606
        %v625 = vsel %vm573, %v622, %v607
        %v626 = vmin.f32 %v616, %v624
        %v627 = vmin.f32 %v617, %v625
        %628 = vrot.lane.b32.xlu0 %v626, 112
        %v629 = vpop.permute.xlu0 %628
        %630 = vrot.lane.b32.xlu0 %v627, 112
        %v631 = vpop.permute.xlu0 %630
        %v632 = vsel %vm582, %v629, %v631
        %v633 = vsel %vm582, %v631, %v629
        %v634 = vsel %vm587, %v632, %v626
        %v635 = vsel %vm588, %v633, %v627
        %v636 = vmin.f32 %v626, %v634
        %v637 = vmin.f32 %v627, %v635
        %638 = vrot.lane.b32.xlu0 %v626, 16
        %v639 = vpop.permute.xlu0 %638
        %640 = vrot.lane.b32.xlu0 %v627, 16
        %v641 = vpop.permute.xlu0 %640
        %v642 = vsel %vm597, %v639, %v641
        %v643 = vsel %vm597, %v641, %v639
        %v644 = vsel %vm602, %v643, %v626
        %v645 = vsel %vm603, %v642, %v627
        %v646 = vmin.f32 %v636, %v644
        %v647 = vmin.f32 %v637, %v645
        %648 = vst [vmem:[%s174] sm:$0xff] %v646
        %649 = vst [vmem:[%s174 + $0x8] sm:$0xff] %v647
        %s650 = sand.u32 %s75, 1
        %s651 = scalar_lea.sflag [#allocation4], %s650
        %s652 = sand.u32 %s75, 1
        %s653 = smul.addr %s652, 16
        %s654 = scalar_lea.vmem [#allocation7], %s653
        // Predicated region
        $region37: #{tpu_custom_call.1} parent=27 // pred_check
          %p655 = pneg %p85
        $region38: #{tpu_custom_call.1} parent=27 // pred_check_branch
          %657 = sbr.rel (%p655) target = $region40
        $region39: #{tpu_custom_call.1} parent=27 // pred_region
          %s659 = ssub.s32 256, 256
          %660 = vsyncadd %s651, %s659
          %s661 = smul.addr %s20, 2
          %s662 = smul.addr %s661, 128
          %s663 = scalar_lea.hbm %s2, %s662
          %s665 = sshll.u32 %s654, 4
          %s666 = int_to_ptr.vmem [resolvable:$true] %s665
          %668 = dma.vmem_to_hbm [thread:$0]  %s666, 256, %s663, %s651
        $region40: #{tpu_custom_call.1} parent=27 // pred_fallthru
          _
      $region28: #{tpu_custom_call.1} parent=5 // pred_fallthru
        _
      %p669 = scmp.le.s32.totalorder 2, %s15
      // Predicated region
      $region41: #{tpu_custom_call.1} parent=5 // pred_check
        %p670 = pneg %p669
      $region42: #{tpu_custom_call.1} parent=5 // pred_check_branch
        %672 = sbr.rel (%p670) target = $region44
      $region43: #{tpu_custom_call.1} parent=5 // pred_region
        %s673 = ssub.s32 %s15, 2
        // Predicated region
        $region45: #{tpu_custom_call.1} parent=43 // pred_check
          %p674 = pneg %p91
        $region46: #{tpu_custom_call.1} parent=43 // pred_check_branch
          %676 = sbr.rel (%p674) target = $region48
        $region47: #{tpu_custom_call.1} parent=43 // pred_region
          %s677 = sand.u32 %s76, 1
          %s678 = scalar_lea.sflag [#allocation4], %s677
          %s679 = sand.u32 %s76, 1
          %s680 = smul.addr %s679, 16
          %s681 = scalar_lea.vmem [#allocation7], %s680
          %682 = dma.done %s678, 256
        $region48: #{tpu_custom_call.1} parent=43 // pred_fallthru
          _
      $region44: #{tpu_custom_call.1} parent=5 // pred_fallthru
        _
    $region6: #{tpu_custom_call.1} parent=1 // loop_footer
      %s19 = sadd.s32 1, %s15
    $region7: #{tpu_custom_call.1} parent=1 // loop_footer_branch
      %14 = sbr.rel target = $region3
    $region8: #{tpu_custom_call.1} parent=1 // loop_exit
      _
    %683 = vsyncpa [#allocation3], 1
    %s684 = scalar_lea.sflag [#allocation3], 1
    %685 = vsyncpa %s684, 1
    %686 = vsyncpa [#allocation6], 1
    %s687 = scalar_lea.sflag [#allocation6], 1
    %688 = vsyncpa %s687, 1
    %689 = vsyncpa [#allocation4], 1
    %s690 = scalar_lea.sflag [#allocation4], 1
    %691 = vsyncpa %s690, 1

</llo_original>
